<compile_context>
chip_gen: v7x
topology: tpu7x:2x2x1
jax: 0.10.0
libtpu: 0.0.40
codegen_flags: <defaults>
</compile_context>

<pallas_src>
import functools

import jax
import jax.numpy as jnp
from jax.experimental import pallas as pl
from jax.experimental.pallas import tpu as pltpu


def _round_up(x, m):
    return (x + m - 1) // m * m


def _softplus(x):
    # numerically stable softplus, lowered with VPU/EUP ops only
    return jnp.maximum(x, 0.0) + jnp.log1p(jnp.exp(-jnp.abs(x)))


def _cnp_kernel(ctx_ref, xobs_ref, slab_ref, out_ref, *, offsets):
    """One grid step == TB batch elements (all matmuls are TB*N rows tall)."""
    TB, Nc, Fc = ctx_ref.shape
    _, No, Fx = xobs_ref.shape

    def param(name):
        row, nrows, ncols = offsets[name]          # static ints; 8/128 aligned
        return slab_ref[row:row + nrows, :ncols]

    def brow(name):                                # bias / mask: one broadcast row
        row, _, ncols = offsets[name]
        return slab_ref[row:row + 1, :ncols]

    def mm(a, w):
        # bf16 operands feed the MXU at native rate; accumulate in f32.
        return jnp.dot(a.astype(jnp.bfloat16), w.astype(jnp.bfloat16),
                       preferred_element_type=jnp.float32)

    w1, w2, w3 = param("w1"), param("w2"), param("w3")
    w4x, w4r = param("w4x"), param("w4r")
    w5, w6 = param("w5"), param("w6")
    b1, b2, b3 = brow("b1"), brow("b2"), brow("b3")
    b4, b5, b6 = brow("b4"), brow("b5"), brow("b6")
    sig_mask = brow("msk")                         # 1.0 on sigma lanes, else 0.0
    H = w1.shape[1]                                # padded hidden width (>=128)
    R = w3.shape[1]                                # padded r_dim width (>=128)

    # Flatten (batch, set) so every layer is one big lane/sublane-aligned matmul.
    ctx = ctx_ref[...].reshape(TB * Nc, Fc)        # [TB*Nc, pad8(dx+dy)]
    xo = xobs_ref[...].reshape(TB * No, Fx)        # [TB*No, pad8(dx)]

    # ---------------- encoder MLP (per context point) ----------------
    h = jnp.maximum(mm(ctx, w1) + b1, 0.0)
    h = jnp.maximum(mm(h, w2) + b2, 0.0)
    r_i = mm(h, w3) + b3                           # [TB*Nc, R]

    # ---------------- mean aggregation over each context set ----------------
    # TODO(synk): assumes a fixed, fully-valid Nc per batch (no ragged/padded sets).
    r = jnp.mean(r_i.reshape(TB, Nc, R), axis=1)   # [TB, R]

    # ---------------- decoder MLP (per target point) ----------------
    # concat(x_obs, r) @ W4 == x_obs @ W4x + r @ W4r  (split-weight trick);
    # the r-term is one [TB, H] matmul broadcast across the No target rows.
    rw = mm(r, w4r)                                # [TB, H]
    d = mm(xo, w4x) + b4                           # [TB*No, H]
    d = jnp.maximum(d.reshape(TB, No, H) + rw[:, None, :], 0.0)
    d = jnp.maximum(mm(d.reshape(TB * No, H), w5) + b5, 0.0)
    out = mm(d, w6) + b6                           # [TB*No, OW] (OW = pad128(2*dy))

    # sigma transform on the sigma lanes, identity on mu lanes; lanes beyond
    # 2*dy are padding (zero weights/bias -> stay 0, sliced away in the wrapper).
    out = jnp.where(sig_mask > 0.5, 0.1 + 0.9 * _softplus(out), out)
    out_ref[...] = out.reshape(TB, No, out_ref.shape[2]).astype(out_ref.dtype)


def _pack_params(params, dx, dy):
    """Zero-pad every weight/bias to 8-row / 128-lane tiles and pack into one
    [rows, 128*k] slab.  Zero-padded K rows / N cols keep the math exact."""
    (w1, b1, w2, b2, w3, b3, w4x, w4r, b4, w5, b5, w6, b6) = [
        p.astype(jnp.float32) for p in params]
    hid = int(w1.shape[1])
    r_dim = int(w3.shape[1])
    H = _round_up(hid, 128)            # padded hidden width
    R = _round_up(r_dim, 128)          # padded representation width
    OW = _round_up(2 * dy, 128)        # padded (mu|sigma) output width
    in_c = _round_up(dx + dy, 8)       # padded context feature width (K of w1)
    in_x = _round_up(dx, 8)            # padded target feature width (K of w4x)

    lanes = jnp.arange(OW)
    sig_mask = ((lanes >= dy) & (lanes < 2 * dy)).astype(jnp.float32)[None, :]

    def pad(a, rows, cols):
        r, c = a.shape
        return jnp.pad(a, ((0, rows - r), (0, cols - c)))

    padded = {
        "w1": pad(w1, in_c, H), "b1": pad(b1, 1, H),
        "w2": pad(w2, H, H),    "b2": pad(b2, 1, H),
        "w3": pad(w3, H, R),    "b3": pad(b3, 1, R),
        "w4x": pad(w4x, in_x, H),
        "w4r": pad(w4r, R, H),
        "b4": pad(b4, 1, H),
        "w5": pad(w5, H, H),    "b5": pad(b5, 1, H),
        "w6": pad(w6, H, OW),   "b6": pad(b6, 1, OW),
        "msk": sig_mask,
    }

    wmax = max(int(p.shape[1]) for p in padded.values())
    offsets, blocks, row = {}, [], 0
    for name, p in padded.items():
        r, c = int(p.shape[0]), int(p.shape[1])
        rp = _round_up(r, 8)                       # 8-aligned sublane block
        offsets[name] = (row, rp, c)
        blocks.append(jnp.pad(p, ((0, rp - r), (0, wmax - c))))
        row += rp
    slab = jnp.concatenate(blocks, axis=0)         # [8k rows, 128k lanes]
    return slab, offsets, in_c, in_x, OW


def _choose_tb(B, Nc, No, target_rows=512, split_min_rows=256):
    """Pick TB (a divisor of B) so TB*max(Nc, No) ~ target_rows.

    Large per-step row counts fill the MXU and amortize the ~0.35us/step
    pipeline overhead; keep >=2 grid steps (for the two v7x TensorCores) only
    when each step still has >= split_min_rows rows.
    """
    set_rows = max(Nc, No, 1)
    cap = max(1, target_rows // set_rows)
    divs = [d for d in range(1, B + 1) if B % d == 0]
    fit = [d for d in divs if d <= cap] or [1]
    tb = max(fit)
    split = [d for d in fit if B // d >= 2 and d * set_rows >= split_min_rows]
    if split:
        tb = max(split)
    return tb


def cnps_forward(x_ctx, y_ctx, x_obs, params, *, target_rows=512):
    B, Nc, dx = x_ctx.shape
    dy = y_ctx.shape[-1]
    No = x_obs.shape[1]

    slab, offsets, in_c, in_x, out_w = _pack_params(params, dx, dy)

    # Glue: concat context inputs/outputs; zero-pad the tiny feature dims to the
    # slab's padded K so first-layer matmuls are sublane-aligned (exact, since
    # the matching weight rows are zero).
    ctx = jnp.concatenate([x_ctx, y_ctx], axis=-1).astype(jnp.float32)
    ctx = jnp.pad(ctx, ((0, 0), (0, 0), (0, in_c - (dx + dy))))
    xo = jnp.pad(x_obs.astype(jnp.float32), ((0, 0), (0, 0), (0, in_x - dx)))
    # TODO(synk): for very large Nc/No a transposed (set-minor) input layout
    # would remove the <128-lane occupancy of these tiny-feature inputs.

    TB = _choose_tb(B, Nc, No, target_rows=target_rows)
    grid = (B // TB,)

    H = offsets["w1"][2]
    R = offsets["w3"][2]

    # Explicit VMEM budget from the actual (lane/sublane padded) block sizes.
    r8 = lambda v: _round_up(v, 8)
    blk_in = TB * (r8(Nc) * _round_up(in_c, 128) + r8(No) * _round_up(in_x, 128)) * 4
    blk_out = TB * r8(No) * out_w * 4
    slab_bytes = slab.shape[0] * slab.shape[1] * 4
    interm = TB * (r8(Nc) * (2 * H + R) + r8(No) * (3 * H + out_w)) * 4
    vmem_est = 2 * (blk_in + blk_out) + slab_bytes + interm + (2 << 20)
    try:
        phys = int(getattr(pltpu.get_tpu_info(), "vmem_capacity_bytes", 64 << 20))
    except Exception:
        phys = 64 << 20             # v7x has the smallest per-core VMEM (64 MiB)
    vmem_limit = int(min(max(2 * vmem_est, 16 << 20), (phys * 3) // 4))

    kernel = functools.partial(_cnp_kernel, offsets=offsets)

    def run(slab_spec):
        return pl.pallas_call(
            kernel,
            grid=grid,
            in_specs=[
                pl.BlockSpec((TB, Nc, in_c), lambda b: (b, 0, 0)),   # ctx block
                pl.BlockSpec((TB, No, in_x), lambda b: (b, 0, 0)),   # x_obs block
                slab_spec,                                           # packed params
            ],
            out_specs=pl.BlockSpec((TB, No, out_w), lambda b: (b, 0, 0)),
            out_shape=jax.ShapeDtypeStruct((B, No, out_w), jnp.float32),
            compiler_params=pltpu.CompilerParams(
                dimension_semantics=("parallel",),
                vmem_limit_bytes=vmem_limit),
        )(ctx, xo, slab)

    # The slab is grid-invariant (index_map always (0, 0)); a single pipeline
    # buffer avoids wasting VMEM on a second copy.  Fall back to the default
    # double-buffered spec if this Pallas build rejects Buffered(1).
    try:
        out = run(pl.BlockSpec(slab.shape, lambda b: (0, 0),
                               pipeline_mode=pl.Buffered(1)))
    except Exception:
        out = run(pl.BlockSpec(slab.shape, lambda b: (0, 0)))

    # mu in lanes [:dy], sigma in lanes [dy:2*dy]; remaining lanes are padding.
    return out[..., :dy], out[..., dy:2 * dy]


def init_params(key, dx, dy, hidden, r_dim, dtype=jnp.float32):
    ks = jax.random.split(key, 7)
    s = 0.1

    def w(k, shape):
        return (s * jax.random.normal(k, shape)).astype(dtype)

    # encoder: (dx+dy) -> hidden -> hidden -> r_dim
    w1 = w(ks[0], (dx + dy, hidden)); b1 = jnp.zeros((1, hidden), dtype)
    w2 = w(ks[1], (hidden, hidden));  b2 = jnp.zeros((1, hidden), dtype)
    w3 = w(ks[2], (hidden, r_dim));   b3 = jnp.zeros((1, r_dim), dtype)
    # decoder: (dx + r_dim) -> hidden -> hidden -> 2*dy
    w4 = w(ks[3], (dx + r_dim, hidden))
    w4x, w4r = w4[:dx, :], w4[dx:, :]
    b4 = jnp.zeros((1, hidden), dtype)
    w5 = w(ks[4], (hidden, hidden));  b5 = jnp.zeros((1, hidden), dtype)
    w6 = w(ks[5], (hidden, 2 * dy));  b6 = jnp.zeros((1, 2 * dy), dtype)
    return (w1, b1, w2, b2, w3, b3, w4x, w4r, b4, w5, b5, w6, b6)


def cnps_reference(x_ctx, y_ctx, x_obs, params):
    # Pure-JAX (f32) reference for correctness checking.
    (w1, b1, w2, b2, w3, b3, w4x, w4r, b4, w5, b5, w6, b6) = params
    ctx = jnp.concatenate([x_ctx, y_ctx], axis=-1)
    h = jax.nn.relu(ctx @ w1 + b1)
    h = jax.nn.relu(h @ w2 + b2)
    r_i = h @ w3 + b3
    r = jnp.mean(r_i, axis=1, keepdims=True)                    # [B, 1, r_dim]
    d = x_obs @ w4x + r @ w4r + b4
    d = jax.nn.relu(d)
    d = jax.nn.relu(d @ w5 + b5)
    out = d @ w6 + b6
    dy = y_ctx.shape[-1]
    mu = out[..., :dy]
    sigma = 0.1 + 0.9 * jax.nn.softplus(out[..., dy:])
    return mu, sigma


if __name__ == "__main__":
    B, Nc, No = 2, 8, 8
    dx, dy = 2, 2
    hidden, r_dim = 32, 32

    key = jax.random.PRNGKey(0)
    k_xc, k_yc, k_xo, k_p = jax.random.split(key, 4)
    x_ctx = jax.random.normal(k_xc, (B, Nc, dx), jnp.float32)
    y_ctx = jax.random.normal(k_yc, (B, Nc, dy), jnp.float32)
    x_obs = jax.random.normal(k_xo, (B, No, dx), jnp.float32)
    params = init_params(k_p, dx, dy, hidden, r_dim)

    mu, sigma = cnps_forward(x_ctx, y_ctx, x_obs, params)
    mu = jax.block_until_ready(mu)
    sigma = jax.block_until_ready(sigma)

    mu_ref, sigma_ref = cnps_reference(x_ctx, y_ctx, x_obs, params)
    assert mu.shape == (B, No, dy) and sigma.shape == (B, No, dy)
    # bf16 MXU operands (f32 accumulation) -> loosened tolerances vs f32 ref.
    assert jnp.allclose(mu, mu_ref, atol=3e-2, rtol=3e-2)
    assert jnp.allclose(sigma, sigma_ref, atol=3e-2, rtol=3e-2)

    print("KERNEL_OK")
</pallas_src>

<mosaic_0001>
module attributes {stable_mosaic.version = 11 : i64} {
  func.func @_cnp_kernel(%arg0: i32, %arg1: memref<2x8x8xf32, #tpu.memory_space<vmem>>, %arg2: memref<2x8x8xf32, #tpu.memory_space<vmem>>, %arg3: memref<712x128xf32, #tpu.memory_space<vmem>>, %arg4: memref<2x8x128xf32, #tpu.memory_space<vmem>>) attributes {dimension_semantics = [#tpu.dimension_semantics<parallel>], iteration_bounds = array<i64: 1>, scalar_prefetch = 0 : i64, scratch_operands = 0 : i64, tpu.core_type = #tpu.core_type<tc>, window_params = [{transform_indices = @transform_0, window_bounds = array<i64: 2, 8, 8>}, {transform_indices = @transform_1, window_bounds = array<i64: 2, 8, 8>}, {pipeline_mode = #tpu.pipeline_mode<synchronous>, transform_indices = @transform_2, window_bounds = array<i64: 712, 128>}, {transform_indices = @transform_3, window_bounds = array<i64: 2, 8, 128>}]} {
    %c0 = arith.constant 0 : index
    %c0_0 = arith.constant 0 : index
    %0 = vector.load %arg3[%c0, %c0_0] : memref<712x128xf32, #tpu.memory_space<vmem>>, vector<8x128xf32>
    %c16 = arith.constant 16 : index
    %c0_1 = arith.constant 0 : index
    %1 = vector.load %arg3[%c16, %c0_1] : memref<712x128xf32, #tpu.memory_space<vmem>>, vector<128x128xf32>
    %c152 = arith.constant 152 : index
    %c0_2 = arith.constant 0 : index
    %2 = vector.load %arg3[%c152, %c0_2] : memref<712x128xf32, #tpu.memory_space<vmem>>, vector<128x128xf32>
    %c288 = arith.constant 288 : index
    %c0_3 = arith.constant 0 : index
    %3 = vector.load %arg3[%c288, %c0_3] : memref<712x128xf32, #tpu.memory_space<vmem>>, vector<8x128xf32>
    %c296 = arith.constant 296 : index
    %c0_4 = arith.constant 0 : index
    %4 = vector.load %arg3[%c296, %c0_4] : memref<712x128xf32, #tpu.memory_space<vmem>>, vector<128x128xf32>
    %c432 = arith.constant 432 : index
    %c0_5 = arith.constant 0 : index
    %5 = vector.load %arg3[%c432, %c0_5] : memref<712x128xf32, #tpu.memory_space<vmem>>, vector<128x128xf32>
    %c568 = arith.constant 568 : index
    %c0_6 = arith.constant 0 : index
    %6 = vector.load %arg3[%c568, %c0_6] : memref<712x128xf32, #tpu.memory_space<vmem>>, vector<128x128xf32>
    %c8 = arith.constant 8 : index
    %c0_7 = arith.constant 0 : index
    %7 = vector.load %arg3[%c8, %c0_7] : memref<712x128xf32, #tpu.memory_space<vmem>>, vector<1x128xf32>
    %c144 = arith.constant 144 : index
    %c0_8 = arith.constant 0 : index
    %8 = vector.load %arg3[%c144, %c0_8] : memref<712x128xf32, #tpu.memory_space<vmem>>, vector<1x128xf32>
    %c280 = arith.constant 280 : index
    %c0_9 = arith.constant 0 : index
    %9 = vector.load %arg3[%c280, %c0_9] : memref<712x128xf32, #tpu.memory_space<vmem>>, vector<1x128xf32>
    %c424 = arith.constant 424 : index
    %c0_10 = arith.constant 0 : index
    %10 = vector.load %arg3[%c424, %c0_10] : memref<712x128xf32, #tpu.memory_space<vmem>>, vector<1x128xf32>
    %c560 = arith.constant 560 : index
    %c0_11 = arith.constant 0 : index
    %11 = vector.load %arg3[%c560, %c0_11] : memref<712x128xf32, #tpu.memory_space<vmem>>, vector<1x128xf32>
    %c696 = arith.constant 696 : index
    %c0_12 = arith.constant 0 : index
    %12 = vector.load %arg3[%c696, %c0_12] : memref<712x128xf32, #tpu.memory_space<vmem>>, vector<1x128xf32>
    %c704 = arith.constant 704 : index
    %c0_13 = arith.constant 0 : index
    %13 = vector.load %arg3[%c704, %c0_13] : memref<712x128xf32, #tpu.memory_space<vmem>>, vector<1x128xf32>
    %c0_14 = arith.constant 0 : index
    %c0_15 = arith.constant 0 : index
    %c0_16 = arith.constant 0 : index
    %14 = vector.load %arg1[%c0_14, %c0_15, %c0_16] : memref<2x8x8xf32, #tpu.memory_space<vmem>>, vector<2x8x8xf32>
    %15 = vector.shape_cast %14 : vector<2x8x8xf32> to vector<16x8xf32>
    %c0_17 = arith.constant 0 : index
    %c0_18 = arith.constant 0 : index
    %c0_19 = arith.constant 0 : index
    %16 = vector.load %arg2[%c0_17, %c0_18, %c0_19] : memref<2x8x8xf32, #tpu.memory_space<vmem>>, vector<2x8x8xf32>
    %17 = vector.shape_cast %16 : vector<2x8x8xf32> to vector<16x8xf32>
    %18 = arith.truncf %15 : vector<16x8xf32> to vector<16x8xbf16>
    %19 = arith.truncf %0 : vector<8x128xf32> to vector<8x128xbf16>
    %cst = arith.constant dense<0.000000e+00> : vector<16x128xf32>
    %20 = tpu.matmul %18, %19, %cst {dimension_numbers = #tpu.dot_dimension_numbers<[1], [0], [0], [1], [0, 0, 1, 1], [], []>} : vector<16x8xbf16>, vector<8x128xbf16>, vector<16x128xf32> -> vector<16x128xf32>
    %21 = vector.broadcast %7 : vector<1x128xf32> to vector<16x128xf32>
    %22 = arith.addf %20, %21 : vector<16x128xf32>
    %cst_20 = arith.constant 0.000000e+00 : f32
    %23 = vector.broadcast %cst_20 : f32 to vector<16x128xf32>
    %24 = arith.maximumf %22, %23 : vector<16x128xf32>
    %25 = arith.truncf %24 : vector<16x128xf32> to vector<16x128xbf16>
    %26 = arith.truncf %1 : vector<128x128xf32> to vector<128x128xbf16>
    %cst_21 = arith.constant dense<0.000000e+00> : vector<16x128xf32>
    %27 = tpu.matmul %25, %26, %cst_21 {dimension_numbers = #tpu.dot_dimension_numbers<[1], [0], [0], [1], [0, 0, 1, 1], [], []>} : vector<16x128xbf16>, vector<128x128xbf16>, vector<16x128xf32> -> vector<16x128xf32>
    %28 = vector.broadcast %8 : vector<1x128xf32> to vector<16x128xf32>
    %29 = arith.addf %27, %28 : vector<16x128xf32>
    %cst_22 = arith.constant 0.000000e+00 : f32
    %30 = vector.broadcast %cst_22 : f32 to vector<16x128xf32>
    %31 = arith.maximumf %29, %30 : vector<16x128xf32>
    %32 = arith.truncf %31 : vector<16x128xf32> to vector<16x128xbf16>
    %33 = arith.truncf %2 : vector<128x128xf32> to vector<128x128xbf16>
    %cst_23 = arith.constant dense<0.000000e+00> : vector<16x128xf32>
    %34 = tpu.matmul %32, %33, %cst_23 {dimension_numbers = #tpu.dot_dimension_numbers<[1], [0], [0], [1], [0, 0, 1, 1], [], []>} : vector<16x128xbf16>, vector<128x128xbf16>, vector<16x128xf32> -> vector<16x128xf32>
    %35 = vector.broadcast %9 : vector<1x128xf32> to vector<16x128xf32>
    %36 = arith.addf %34, %35 : vector<16x128xf32>
    %37 = vector.shape_cast %36 : vector<16x128xf32> to vector<2x8x128xf32>
    %cst_24 = arith.constant dense<0.000000e+00> : vector<2x128xf32>
    %38 = vector.multi_reduction <add>, %37, %cst_24 [1] : vector<2x8x128xf32> to vector<2x128xf32>
    %cst_25 = arith.constant 8.000000e+00 : f32
    %39 = vector.broadcast %cst_25 : f32 to vector<2x128xf32>
    %40 = arith.divf %38, %39 : vector<2x128xf32>
    %41 = arith.truncf %40 : vector<2x128xf32> to vector<2x128xbf16>
    %42 = arith.truncf %4 : vector<128x128xf32> to vector<128x128xbf16>
    %cst_26 = arith.constant dense<0.000000e+00> : vector<2x128xf32>
    %43 = tpu.matmul %41, %42, %cst_26 {dimension_numbers = #tpu.dot_dimension_numbers<[1], [0], [0], [1], [0, 0, 1, 1], [], []>} : vector<2x128xbf16>, vector<128x128xbf16>, vector<2x128xf32> -> vector<2x128xf32>
    %44 = arith.truncf %17 : vector<16x8xf32> to vector<16x8xbf16>
    %45 = arith.truncf %3 : vector<8x128xf32> to vector<8x128xbf16>
    %cst_27 = arith.constant dense<0.000000e+00> : vector<16x128xf32>
    %46 = tpu.matmul %44, %45, %cst_27 {dimension_numbers = #tpu.dot_dimension_numbers<[1], [0], [0], [1], [0, 0, 1, 1], [], []>} : vector<16x8xbf16>, vector<8x128xbf16>, vector<16x128xf32> -> vector<16x128xf32>
    %47 = vector.broadcast %10 : vector<1x128xf32> to vector<16x128xf32>
    %48 = arith.addf %46, %47 : vector<16x128xf32>
    %49 = vector.shape_cast %48 : vector<16x128xf32> to vector<2x8x128xf32>
    %50 = vector.shape_cast %43 : vector<2x128xf32> to vector<2x1x128xf32>
    %51 = vector.broadcast %50 : vector<2x1x128xf32> to vector<2x8x128xf32>
    %52 = arith.addf %49, %51 : vector<2x8x128xf32>
    %cst_28 = arith.constant 0.000000e+00 : f32
    %53 = vector.broadcast %cst_28 : f32 to vector<2x8x128xf32>
    %54 = arith.maximumf %52, %53 : vector<2x8x128xf32>
    %55 = vector.shape_cast %54 : vector<2x8x128xf32> to vector<16x128xf32>
    %56 = arith.truncf %55 : vector<16x128xf32> to vector<16x128xbf16>
    %57 = arith.truncf %5 : vector<128x128xf32> to vector<128x128xbf16>
    %cst_29 = arith.constant dense<0.000000e+00> : vector<16x128xf32>
    %58 = tpu.matmul %56, %57, %cst_29 {dimension_numbers = #tpu.dot_dimension_numbers<[1], [0], [0], [1], [0, 0, 1, 1], [], []>} : vector<16x128xbf16>, vector<128x128xbf16>, vector<16x128xf32> -> vector<16x128xf32>
    %59 = vector.broadcast %11 : vector<1x128xf32> to vector<16x128xf32>
    %60 = arith.addf %58, %59 : vector<16x128xf32>
    %cst_30 = arith.constant 0.000000e+00 : f32
    %61 = vector.broadcast %cst_30 : f32 to vector<16x128xf32>
    %62 = arith.maximumf %60, %61 : vector<16x128xf32>
    %63 = arith.truncf %62 : vector<16x128xf32> to vector<16x128xbf16>
    %64 = arith.truncf %6 : vector<128x128xf32> to vector<128x128xbf16>
    %cst_31 = arith.constant dense<0.000000e+00> : vector<16x128xf32>
    %65 = tpu.matmul %63, %64, %cst_31 {dimension_numbers = #tpu.dot_dimension_numbers<[1], [0], [0], [1], [0, 0, 1, 1], [], []>} : vector<16x128xbf16>, vector<128x128xbf16>, vector<16x128xf32> -> vector<16x128xf32>
    %66 = vector.broadcast %12 : vector<1x128xf32> to vector<16x128xf32>
    %67 = arith.addf %65, %66 : vector<16x128xf32>
    %cst_32 = arith.constant 5.000000e-01 : f32
    %68 = vector.broadcast %cst_32 : f32 to vector<1x128xf32>
    %69 = arith.cmpf ogt, %13, %68 : vector<1x128xf32>
    %cst_33 = arith.constant 0.000000e+00 : f32
    %70 = vector.broadcast %cst_33 : f32 to vector<16x128xf32>
    %71 = arith.maximumf %67, %70 : vector<16x128xf32>
    %72 = math.absf %67 : vector<16x128xf32>
    %cst_34 = arith.constant 0.000000e+00 : f32
    %73 = vector.broadcast %cst_34 : f32 to vector<16x128xf32>
    %74 = arith.subf %73, %72 : vector<16x128xf32>
    %75 = math.exp %74 : vector<16x128xf32>
    %76 = math.log1p %75 : vector<16x128xf32>
    %77 = arith.addf %71, %76 : vector<16x128xf32>
    %cst_35 = arith.constant 0.899999976 : f32
    %78 = vector.broadcast %cst_35 : f32 to vector<16x128xf32>
    %79 = arith.mulf %78, %77 : vector<16x128xf32>
    %cst_36 = arith.constant 1.000000e-01 : f32
    %80 = vector.broadcast %cst_36 : f32 to vector<16x128xf32>
    %81 = arith.addf %80, %79 : vector<16x128xf32>
    %82 = vector.shape_cast %69 : vector<1x128xi1> to vector<1x128xi1>
    %83 = vector.broadcast %82 : vector<1x128xi1> to vector<16x128xi1>
    %84 = arith.select %83, %81, %67 : vector<16x128xi1>, vector<16x128xf32>
    %85 = vector.shape_cast %84 : vector<16x128xf32> to vector<2x8x128xf32>
    %c0_37 = arith.constant 0 : index
    %c0_38 = arith.constant 0 : index
    %c0_39 = arith.constant 0 : index
    %86 = vector.load %arg4[%c0_37, %c0_38, %c0_39] : memref<2x8x128xf32, #tpu.memory_space<vmem>>, vector<2x8x128xf32>
    tpu.vector_store %arg4[%c0_37, %c0_38, %c0_39], %85 {strides = array<i32>} : memref<2x8x128xf32, #tpu.memory_space<vmem>>, vector<2x8x128xf32>,
    return
  }
  func.func @transform_0(%arg0: i32) -> (i32, i32, i32) {
    %c0_i32 = arith.constant 0 : i32
    %c0_i32_0 = arith.constant 0 : i32
    %c0_i32_1 = arith.constant 0 : i32
    return %arg0, %c0_i32, %c0_i32_0 : i32, i32, i32
  }
  func.func @transform_1(%arg0: i32) -> (i32, i32, i32) {
    %c0_i32 = arith.constant 0 : i32
    %c0_i32_0 = arith.constant 0 : i32
    %c0_i32_1 = arith.constant 0 : i32
    return %arg0, %c0_i32, %c0_i32_0 : i32, i32, i32
  }
  func.func @transform_2(%arg0: i32) -> (i32, i32) {
    %c0_i32 = arith.constant 0 : i32
    %c0_i32_0 = arith.constant 0 : i32
    %c0_i32_1 = arith.constant 0 : i32
    return %c0_i32, %c0_i32_0 : i32, i32
  }
  func.func @transform_3(%arg0: i32) -> (i32, i32, i32) {
    %c0_i32 = arith.constant 0 : i32
    %c0_i32_0 = arith.constant 0 : i32
    %c0_i32_1 = arith.constant 0 : i32
    return %arg0, %c0_i32, %c0_i32_0 : i32, i32, i32
  }
}

module attributes {stable_mosaic.version = 11 : i64} {
  func.func @_cnp_kernel(%arg0: i32, %arg1: memref<2x8x8xf32, #tpu.memory_space<vmem>>, %arg2: memref<2x8x8xf32, #tpu.memory_space<vmem>>, %arg3: memref<712x128xf32, #tpu.memory_space<vmem>>, %arg4: memref<2x8x128xf32, #tpu.memory_space<vmem>>) attributes {dimension_semantics = [#tpu.dimension_semantics<parallel>], iteration_bounds = array<i64: 1>, scalar_prefetch = 0 : i64, scratch_operands = 0 : i64, tpu.core_type = #tpu.core_type<tc>, window_params = [{transform_indices = @transform_0, window_bounds = array<i64: 2, 8, 8>}, {transform_indices = @transform_1, window_bounds = array<i64: 2, 8, 8>}, {pipeline_mode = #tpu.pipeline_mode<synchronous>, transform_indices = @transform_2, window_bounds = array<i64: 712, 128>}, {transform_indices = @transform_3, window_bounds = array<i64: 2, 8, 128>}]} {
    %c0 = arith.constant 0 : index
    %c0_0 = arith.constant 0 : index
    %0 = vector.load %arg3[%c0, %c0_0] : memref<712x128xf32, #tpu.memory_space<vmem>>, vector<8x128xf32>
    %c16 = arith.constant 16 : index
    %c0_1 = arith.constant 0 : index
    %1 = vector.load %arg3[%c16, %c0_1] : memref<712x128xf32, #tpu.memory_space<vmem>>, vector<128x128xf32>
    %c152 = arith.constant 152 : index
    %c0_2 = arith.constant 0 : index
    %2 = vector.load %arg3[%c152, %c0_2] : memref<712x128xf32, #tpu.memory_space<vmem>>, vector<128x128xf32>
    %c288 = arith.constant 288 : index
    %c0_3 = arith.constant 0 : index
    %3 = vector.load %arg3[%c288, %c0_3] : memref<712x128xf32, #tpu.memory_space<vmem>>, vector<8x128xf32>
    %c296 = arith.constant 296 : index
    %c0_4 = arith.constant 0 : index
    %4 = vector.load %arg3[%c296, %c0_4] : memref<712x128xf32, #tpu.memory_space<vmem>>, vector<128x128xf32>
    %c432 = arith.constant 432 : index
    %c0_5 = arith.constant 0 : index
    %5 = vector.load %arg3[%c432, %c0_5] : memref<712x128xf32, #tpu.memory_space<vmem>>, vector<128x128xf32>
    %c568 = arith.constant 568 : index
    %c0_6 = arith.constant 0 : index
    %6 = vector.load %arg3[%c568, %c0_6] : memref<712x128xf32, #tpu.memory_space<vmem>>, vector<128x128xf32>
    %c8 = arith.constant 8 : index
    %c0_7 = arith.constant 0 : index
    %7 = vector.load %arg3[%c8, %c0_7] : memref<712x128xf32, #tpu.memory_space<vmem>>, vector<1x128xf32>
    %c144 = arith.constant 144 : index
    %c0_8 = arith.constant 0 : index
    %8 = vector.load %arg3[%c144, %c0_8] : memref<712x128xf32, #tpu.memory_space<vmem>>, vector<1x128xf32>
    %c280 = arith.constant 280 : index
    %c0_9 = arith.constant 0 : index
    %9 = vector.load %arg3[%c280, %c0_9] : memref<712x128xf32, #tpu.memory_space<vmem>>, vector<1x128xf32>
    %c424 = arith.constant 424 : index
    %c0_10 = arith.constant 0 : index
    %10 = vector.load %arg3[%c424, %c0_10] : memref<712x128xf32, #tpu.memory_space<vmem>>, vector<1x128xf32>
    %c560 = arith.constant 560 : index
    %c0_11 = arith.constant 0 : index
    %11 = vector.load %arg3[%c560, %c0_11] : memref<712x128xf32, #tpu.memory_space<vmem>>, vector<1x128xf32>
    %c696 = arith.constant 696 : index
    %c0_12 = arith.constant 0 : index
    %12 = vector.load %arg3[%c696, %c0_12] : memref<712x128xf32, #tpu.memory_space<vmem>>, vector<1x128xf32>
    %c704 = arith.constant 704 : index
    %c0_13 = arith.constant 0 : index
    %13 = vector.load %arg3[%c704, %c0_13] : memref<712x128xf32, #tpu.memory_space<vmem>>, vector<1x128xf32>
    %c0_14 = arith.constant 0 : index
    %c0_15 = arith.constant 0 : index
    %c0_16 = arith.constant 0 : index
    %14 = vector.load %arg1[%c0_14, %c0_15, %c0_16] : memref<2x8x8xf32, #tpu.memory_space<vmem>>, vector<2x8x8xf32>
    %15 = vector.shape_cast %14 : vector<2x8x8xf32> to vector<16x8xf32>
    %c0_17 = arith.constant 0 : index
    %c0_18 = arith.constant 0 : index
    %c0_19 = arith.constant 0 : index
    %16 = vector.load %arg2[%c0_17, %c0_18, %c0_19] : memref<2x8x8xf32, #tpu.memory_space<vmem>>, vector<2x8x8xf32>
    %17 = vector.shape_cast %16 : vector<2x8x8xf32> to vector<16x8xf32>
    %18 = arith.truncf %15 : vector<16x8xf32> to vector<16x8xbf16>
    %19 = arith.truncf %0 : vector<8x128xf32> to vector<8x128xbf16>
    %cst = arith.constant dense<0.000000e+00> : vector<16x128xf32>
    %20 = tpu.matmul %18, %19, %cst {dimension_numbers = #tpu.dot_dimension_numbers<[1], [0], [0], [1], [0, 0, 1, 1], [], []>} : vector<16x8xbf16>, vector<8x128xbf16>, vector<16x128xf32> -> vector<16x128xf32>
    %21 = vector.broadcast %7 : vector<1x128xf32> to vector<16x128xf32>
    %22 = arith.addf %20, %21 : vector<16x128xf32>
    %cst_20 = arith.constant 0.000000e+00 : f32
    %23 = vector.broadcast %cst_20 : f32 to vector<16x128xf32>
    %24 = arith.maximumf %22, %23 : vector<16x128xf32>
    %25 = arith.truncf %24 : vector<16x128xf32> to vector<16x128xbf16>
    %26 = arith.truncf %1 : vector<128x128xf32> to vector<128x128xbf16>
    %cst_21 = arith.constant dense<0.000000e+00> : vector<16x128xf32>
    %27 = tpu.matmul %25, %26, %cst_21 {dimension_numbers = #tpu.dot_dimension_numbers<[1], [0], [0], [1], [0, 0, 1, 1], [], []>} : vector<16x128xbf16>, vector<128x128xbf16>, vector<16x128xf32> -> vector<16x128xf32>
    %28 = vector.broadcast %8 : vector<1x128xf32> to vector<16x128xf32>
    %29 = arith.addf %27, %28 : vector<16x128xf32>
    %cst_22 = arith.constant 0.000000e+00 : f32
    %30 = vector.broadcast %cst_22 : f32 to vector<16x128xf32>
    %31 = arith.maximumf %29, %30 : vector<16x128xf32>
    %32 = arith.truncf %31 : vector<16x128xf32> to vector<16x128xbf16>
    %33 = arith.truncf %2 : vector<128x128xf32> to vector<128x128xbf16>
    %cst_23 = arith.constant dense<0.000000e+00> : vector<16x128xf32>
    %34 = tpu.matmul %32, %33, %cst_23 {dimension_numbers = #tpu.dot_dimension_numbers<[1], [0], [0], [1], [0, 0, 1, 1], [], []>} : vector<16x128xbf16>, vector<128x128xbf16>, vector<16x128xf32> -> vector<16x128xf32>
    %35 = vector.broadcast %9 : vector<1x128xf32> to vector<16x128xf32>
    %36 = arith.addf %34, %35 : vector<16x128xf32>
    %37 = vector.shape_cast %36 : vector<16x128xf32> to vector<2x8x128xf32>
    %cst_24 = arith.constant dense<0.000000e+00> : vector<2x128xf32>
    %38 = vector.multi_reduction <add>, %37, %cst_24 [1] : vector<2x8x128xf32> to vector<2x128xf32>
    %cst_25 = arith.constant 8.000000e+00 : f32
    %39 = vector.broadcast %cst_25 : f32 to vector<2x128xf32>
    %40 = arith.divf %38, %39 : vector<2x128xf32>
    %41 = arith.truncf %40 : vector<2x128xf32> to vector<2x128xbf16>
    %42 = arith.truncf %4 : vector<128x128xf32> to vector<128x128xbf16>
    %cst_26 = arith.constant dense<0.000000e+00> : vector<2x128xf32>
    %43 = tpu.matmul %41, %42, %cst_26 {dimension_numbers = #tpu.dot_dimension_numbers<[1], [0], [0], [1], [0, 0, 1, 1], [], []>} : vector<2x128xbf16>, vector<128x128xbf16>, vector<2x128xf32> -> vector<2x128xf32>
    %44 = arith.truncf %17 : vector<16x8xf32> to vector<16x8xbf16>
    %45 = arith.truncf %3 : vector<8x128xf32> to vector<8x128xbf16>
    %cst_27 = arith.constant dense<0.000000e+00> : vector<16x128xf32>
    %46 = tpu.matmul %44, %45, %cst_27 {dimension_numbers = #tpu.dot_dimension_numbers<[1], [0], [0], [1], [0, 0, 1, 1], [], []>} : vector<16x8xbf16>, vector<8x128xbf16>, vector<16x128xf32> -> vector<16x128xf32>
    %47 = vector.broadcast %10 : vector<1x128xf32> to vector<16x128xf32>
    %48 = arith.addf %46, %47 : vector<16x128xf32>
    %49 = vector.shape_cast %48 : vector<16x128xf32> to vector<2x8x128xf32>
    %50 = vector.shape_cast %43 : vector<2x128xf32> to vector<2x1x128xf32>
    %51 = vector.broadcast %50 : vector<2x1x128xf32> to vector<2x8x128xf32>
    %52 = arith.addf %49, %51 : vector<2x8x128xf32>
    %cst_28 = arith.constant 0.000000e+00 : f32
    %53 = vector.broadcast %cst_28 : f32 to vector<2x8x128xf32>
    %54 = arith.maximumf %52, %53 : vector<2x8x128xf32>
    %55 = vector.shape_cast %54 : vector<2x8x128xf32> to vector<16x128xf32>
    %56 = arith.truncf %55 : vector<16x128xf32> to vector<16x128xbf16>
    %57 = arith.truncf %5 : vector<128x128xf32> to vector<128x128xbf16>
    %cst_29 = arith.constant dense<0.000000e+00> : vector<16x128xf32>
    %58 = tpu.matmul %56, %57, %cst_29 {dimension_numbers = #tpu.dot_dimension_numbers<[1], [0], [0], [1], [0, 0, 1, 1], [], []>} : vector<16x128xbf16>, vector<128x128xbf16>, vector<16x128xf32> -> vector<16x128xf32>
    %59 = vector.broadcast %11 : vector<1x128xf32> to vector<16x128xf32>
    %60 = arith.addf %58, %59 : vector<16x128xf32>
    %cst_30 = arith.constant 0.000000e+00 : f32
    %61 = vector.broadcast %cst_30 : f32 to vector<16x128xf32>
    %62 = arith.maximumf %60, %61 : vector<16x128xf32>
    %63 = arith.truncf %62 : vector<16x128xf32> to vector<16x128xbf16>
    %64 = arith.truncf %6 : vector<128x128xf32> to vector<128x128xbf16>
    %cst_31 = arith.constant dense<0.000000e+00> : vector<16x128xf32>
    %65 = tpu.matmul %63, %64, %cst_31 {dimension_numbers = #tpu.dot_dimension_numbers<[1], [0], [0], [1], [0, 0, 1, 1], [], []>} : vector<16x128xbf16>, vector<128x128xbf16>, vector<16x128xf32> -> vector<16x128xf32>
    %66 = vector.broadcast %12 : vector<1x128xf32> to vector<16x128xf32>
    %67 = arith.addf %65, %66 : vector<16x128xf32>
    %cst_32 = arith.constant 5.000000e-01 : f32
    %68 = vector.broadcast %cst_32 : f32 to vector<1x128xf32>
    %69 = arith.cmpf ogt, %13, %68 : vector<1x128xf32>
    %cst_33 = arith.constant 0.000000e+00 : f32
    %70 = vector.broadcast %cst_33 : f32 to vector<16x128xf32>
    %71 = arith.maximumf %67, %70 : vector<16x128xf32>
    %72 = math.absf %67 : vector<16x128xf32>
    %cst_34 = arith.constant 0.000000e+00 : f32
    %73 = vector.broadcast %cst_34 : f32 to vector<16x128xf32>
    %74 = arith.subf %73, %72 : vector<16x128xf32>
    %75 = math.exp %74 : vector<16x128xf32>
    %76 = math.log1p %75 : vector<16x128xf32>
    %77 = arith.addf %71, %76 : vector<16x128xf32>
    %cst_35 = arith.constant 0.899999976 : f32
    %78 = vector.broadcast %cst_35 : f32 to vector<16x128xf32>
    %79 = arith.mulf %78, %77 : vector<16x128xf32>
    %cst_36 = arith.constant 1.000000e-01 : f32
    %80 = vector.broadcast %cst_36 : f32 to vector<16x128xf32>
    %81 = arith.addf %80, %79 : vector<16x128xf32>
    %82 = vector.shape_cast %69 : vector<1x128xi1> to vector<1x128xi1>
    %83 = vector.broadcast %82 : vector<1x128xi1> to vector<16x128xi1>
    %84 = arith.select %83, %81, %67 : vector<16x128xi1>, vector<16x128xf32>
    %85 = vector.shape_cast %84 : vector<16x128xf32> to vector<2x8x128xf32>
    %c0_37 = arith.constant 0 : index
    %c0_38 = arith.constant 0 : index
    %c0_39 = arith.constant 0 : index
    %86 = vector.load %arg4[%c0_37, %c0_38, %c0_39] : memref<2x8x128xf32, #tpu.memory_space<vmem>>, vector<2x8x128xf32>
    tpu.vector_store %arg4[%c0_37, %c0_38, %c0_39], %85 {strides = array<i32>} : memref<2x8x128xf32, #tpu.memory_space<vmem>>, vector<2x8x128xf32>,
    return
  }
  func.func @transform_0(%arg0: i32) -> (i32, i32, i32) {
    %c0_i32 = arith.constant 0 : i32
    %c0_i32_0 = arith.constant 0 : i32
    %c0_i32_1 = arith.constant 0 : i32
    return %arg0, %c0_i32, %c0_i32_0 : i32, i32, i32
  }
  func.func @transform_1(%arg0: i32) -> (i32, i32, i32) {
    %c0_i32 = arith.constant 0 : i32
    %c0_i32_0 = arith.constant 0 : i32
    %c0_i32_1 = arith.constant 0 : i32
    return %arg0, %c0_i32, %c0_i32_0 : i32, i32, i32
  }
  func.func @transform_2(%arg0: i32) -> (i32, i32) {
    %c0_i32 = arith.constant 0 : i32
    %c0_i32_0 = arith.constant 0 : i32
    %c0_i32_1 = arith.constant 0 : i32
    return %c0_i32, %c0_i32_0 : i32, i32
  }
  func.func @transform_3(%arg0: i32) -> (i32, i32, i32) {
    %c0_i32 = arith.constant 0 : i32
    %c0_i32_0 = arith.constant 0 : i32
    %c0_i32_1 = arith.constant 0 : i32
    return %arg0, %c0_i32, %c0_i32_0 : i32, i32, i32
  }
}

</mosaic_0001>

<llo_original>
// kernel: tpu_custom_call.1
$region0: #{tpu_custom_call.1}
  #allocation0 [shape = 'u32[]', space=smem, size = 0x4, offset = 0x4, fixed_abs, tag = 'smem constant byte address 0x4 - core index']
  #allocation1 [shape = 'u32[144,128]{1,0:T(1,128)}', space=vmem, size = 0x12000, scoped, tag = 'internal scratch']
  %s0 = inlined_call_operand.hbm [shape: f32[2,8,8], index: 0, kind: input, shape index: {}]
  %s1 = inlined_call_operand.hbm [shape: f32[2,8,8], index: 1, kind: input, shape index: {}]
  %s2 = inlined_call_operand.hbm [shape: f32[712,128], index: 2, kind: input, shape index: {}]
  %s3 = inlined_call_operand.hbm [shape: f32[2,8,128], index: 3, kind: output, shape index: {}]
  %s4 = sld [smem:[#allocation0]]
  $region34: #{tpu_custom_call.1} parent=0
    _
  %s6 = ssub.s32 1, %s4
  %s7 = scalar_select 0, %s6, %s4
  $region1: #{tpu_custom_call.1} parent=0
    #allocation2 [shape = 'u8[8192]{0}', space=vmem, size = 0x2000, scoped, tag = 'input window, operand 0, single buffered']
    #allocation3 [shape = 's32[1]{0}', space=sflag, size = 0x4, scoped, tag = 'scoped memory for tpu_custom_call.1']
    #allocation4 [shape = 's32[1]{0}', space=sflag, size = 0x4, scoped, tag = 'scoped memory for tpu_custom_call.1']
    #allocation5 [shape = 'u8[8192]{0}', space=vmem, size = 0x2000, scoped, tag = 'input window, operand 1, single buffered']
    #allocation6 [shape = 's32[1]{0}', space=sflag, size = 0x4, scoped, tag = 'scoped memory for tpu_custom_call.1']
    #allocation7 [shape = 'u8[364544]{0}', space=vmem, size = 0x59000, scoped, tag = 'input window, operand 2, single buffered']
    #allocation8 [shape = 'u8[8192]{0}', space=vmem, size = 0x2000, scoped, tag = 'output window, operand 0, single buffered']
    %8 = vsyncpa [#allocation3], 0
    %9 = vsyncpa [#allocation6], 0
    %10 = vsyncpa [#allocation4], 0
    // Predicated region
    $region2: #{tpu_custom_call.1} parent=1 // pred_check
      _
    $region3: #{tpu_custom_call.1} parent=1 // pred_check_branch
      %12 = sbr.rel (0) target = $region5
    $region4: #{tpu_custom_call.1} parent=1 // pred_region
      %s14 = ssub.s32 256, 256
      %15 = vsyncadd [#allocation3], %s14
      %s16 = sshll.u32 [#allocation2], 4
      %s17 = int_to_ptr.vmem [resolvable:$true] %s16
      %22 = dma.hbm_to_vmem [thread:$0]  %s0, 256, %s17, [#allocation3], 128, 128, 8
    $region5: #{tpu_custom_call.1} parent=1 // pred_fallthru
      _
    // Predicated region
    $region6: #{tpu_custom_call.1} parent=1 // pred_check
      _
    $region7: #{tpu_custom_call.1} parent=1 // pred_check_branch
      %24 = sbr.rel (0) target = $region9
    $region8: #{tpu_custom_call.1} parent=1 // pred_region
      %s26 = ssub.s32 256, 256
      %27 = vsyncadd [#allocation6], %s26
      %s28 = sshll.u32 [#allocation5], 4
      %s29 = int_to_ptr.vmem [resolvable:$true] %s28
      %34 = dma.hbm_to_vmem [thread:$0]  %s1, 256, %s29, [#allocation6], 128, 128, 8
    $region9: #{tpu_custom_call.1} parent=1 // pred_fallthru
      _
    // Predicated region
    $region10: #{tpu_custom_call.1} parent=1 // pred_check
      _
    $region11: #{tpu_custom_call.1} parent=1 // pred_check_branch
      %36 = sbr.rel (0) target = $region13
    $region12: #{tpu_custom_call.1} parent=1 // pred_region
      %s38 = ssub.s32 11392, 11392
      %39 = vsyncadd [#allocation6], %s38
      %s40 = sshll.u32 [#allocation7], 4
      %s41 = int_to_ptr.vmem [resolvable:$true] %s40
      %46 = dma.hbm_to_vmem [thread:$0]  %s2, 11392, %s41, [#allocation6], 128, 128, 8
    $region13: #{tpu_custom_call.1} parent=1 // pred_fallthru
      _
    // Predicated region
    $region14: #{tpu_custom_call.1} parent=1 // pred_check
      _
    $region15: #{tpu_custom_call.1} parent=1 // pred_check_branch
      %48 = sbr.rel (0) target = $region17
    $region16: #{tpu_custom_call.1} parent=1 // pred_region
      %49 = dma.done [#allocation3], 256
    $region17: #{tpu_custom_call.1} parent=1 // pred_fallthru
      _
    // Predicated region
    $region18: #{tpu_custom_call.1} parent=1 // pred_check
      _
    $region19: #{tpu_custom_call.1} parent=1 // pred_check_branch
      %51 = sbr.rel (0) target = $region21
    $region20: #{tpu_custom_call.1} parent=1 // pred_region
      %52 = dma.done [#allocation6], 256
    $region21: #{tpu_custom_call.1} parent=1 // pred_fallthru
      _
    // Predicated region
    $region22: #{tpu_custom_call.1} parent=1 // pred_check
      _
    $region23: #{tpu_custom_call.1} parent=1 // pred_check_branch
      %54 = sbr.rel (0) target = $region25
    $region24: #{tpu_custom_call.1} parent=1 // pred_region
      %55 = dma.done [#allocation6], 11392
    $region25: #{tpu_custom_call.1} parent=1 // pred_fallthru
      _
    %v57 = vld [vmem:[#allocation7] sm:$0xff]
    %v58 = vld [vmem:[#allocation7 + $0x10] sm:$0xff]
    %v59 = vld [vmem:[#allocation7 + $0x18] sm:$0xff]
    %v60 = vld [vmem:[#allocation7 + $0x20] sm:$0xff]
    %v61 = vld [vmem:[#allocation7 + $0x28] sm:$0xff]
    %v62 = vld [vmem:[#allocation7 + $0x30] sm:$0xff]
    %v63 = vld [vmem:[#allocation7 + $0x38] sm:$0xff]
    %v64 = vld [vmem:[#allocation7 + $0x40] sm:$0xff]
    %v65 = vld [vmem:[#allocation7 + $0x48] sm:$0xff]
    %v66 = vld [vmem:[#allocation7 + $0x50] sm:$0xff]
    %v67 = vld [vmem:[#allocation7 + $0x58] sm:$0xff]
    %v68 = vld [vmem:[#allocation7 + $0x60] sm:$0xff]
    %v69 = vld [vmem:[#allocation7 + $0x68] sm:$0xff]
    %v70 = vld [vmem:[#allocation7 + $0x70] sm:$0xff]
    %v71 = vld [vmem:[#allocation7 + $0x78] sm:$0xff]
    %v72 = vld [vmem:[#allocation7 + $0x80] sm:$0xff]
    %v73 = vld [vmem:[#allocation7 + $0x88] sm:$0xff]
    %v74 = vld [vmem:[#allocation7 + $0x98] sm:$0xff]
    %v75 = vld [vmem:[#allocation7 + $0xa0] sm:$0xff]
    %v76 = vld [vmem:[#allocation7 + $0xa8] sm:$0xff]
    %v77 = vld [vmem:[#allocation7 + $0xb0] sm:$0xff]
    %v78 = vld [vmem:[#allocation7 + $0xb8] sm:$0xff]
    %v79 = vld [vmem:[#allocation7 + $0xc0] sm:$0xff]
    %v80 = vld [vmem:[#allocation7 + $0xc8] sm:$0xff]
    %v81 = vld [vmem:[#allocation7 + $0xd0] sm:$0xff]
    %v82 = vld [vmem:[#allocation7 + $0xd8] sm:$0xff]
    %v83 = vld [vmem:[#allocation7 + $0xe0] sm:$0xff]
    %v84 = vld [vmem:[#allocation7 + $0xe8] sm:$0xff]
    %v85 = vld [vmem:[#allocation7 + $0xf0] sm:$0xff]
    %v86 = vld [vmem:[#allocation7 + $0xf8] sm:$0xff]
    %v87 = vld [vmem:[#allocation7 + $0x100] sm:$0xff]
    %v88 = vld [vmem:[#allocation7 + $0x108] sm:$0xff]
    %v89 = vld [vmem:[#allocation7 + $0x110] sm:$0xff]
    %v90 = vld [vmem:[#allocation7 + $0x120] sm:$0xff]
    %v91 = vld [vmem:[#allocation7 + $0x128] sm:$0xff]
    %v92 = vld [vmem:[#allocation7 + $0x130] sm:$0xff]
    %v93 = vld [vmem:[#allocation7 + $0x138] sm:$0xff]
    %v94 = vld [vmem:[#allocation7 + $0x140] sm:$0xff]
    %v95 = vld [vmem:[#allocation7 + $0x148] sm:$0xff]
    %v96 = vld [vmem:[#allocation7 + $0x150] sm:$0xff]
    %v97 = vld [vmem:[#allocation7 + $0x158] sm:$0xff]
    %v98 = vld [vmem:[#allocation7 + $0x160] sm:$0xff]
    %v99 = vld [vmem:[#allocation7 + $0x168] sm:$0xff]
    %v100 = vld [vmem:[#allocation7 + $0x170] sm:$0xff]
    %v101 = vld [vmem:[#allocation7 + $0x178] sm:$0xff]
    %v102 = vld [vmem:[#allocation7 + $0x180] sm:$0xff]
    %v103 = vld [vmem:[#allocation7 + $0x188] sm:$0xff]
    %v104 = vld [vmem:[#allocation7 + $0x190] sm:$0xff]
    %v105 = vld [vmem:[#allocation7 + $0x198] sm:$0xff]
    %v106 = vld [vmem:[#allocation7 + $0x1a0] sm:$0xff]
    %v107 = vld [vmem:[#allocation7 + $0x1b0] sm:$0xff]
    %v108 = vld [vmem:[#allocation7 + $0x1b8] sm:$0xff]
    %v109 = vld [vmem:[#allocation7 + $0x1c0] sm:$0xff]
    %v110 = vld [vmem:[#allocation7 + $0x1c8] sm:$0xff]
    %v111 = vld [vmem:[#allocation7 + $0x1d0] sm:$0xff]
    %v112 = vld [vmem:[#allocation7 + $0x1d8] sm:$0xff]
    %v113 = vld [vmem:[#allocation7 + $0x1e0] sm:$0xff]
    %v114 = vld [vmem:[#allocation7 + $0x1e8] sm:$0xff]
    %v115 = vld [vmem:[#allocation7 + $0x1f0] sm:$0xff]
    %v116 = vld [vmem:[#allocation7 + $0x1f8] sm:$0xff]
    %v117 = vld [vmem:[#allocation7 + $0x200] sm:$0xff]
    %v118 = vld [vmem:[#allocation7 + $0x208] sm:$0xff]
    %v119 = vld [vmem:[#allocation7 + $0x210] sm:$0xff]
    %v120 = vld [vmem:[#allocation7 + $0x218] sm:$0xff]
    %v121 = vld [vmem:[#allocation7 + $0x220] sm:$0xff]
    %v122 = vld [vmem:[#allocation7 + $0x228] sm:$0xff]
    %v123 = vld [vmem:[#allocation7 + $0x238] sm:$0xff]
    %v124 = vld [vmem:[#allocation7 + $0x240] sm:$0xff]
    %v125 = vld [vmem:[#allocation7 + $0x248] sm:$0xff]
    %v126 = vld [vmem:[#allocation7 + $0x250] sm:$0xff]
    %v127 = vld [vmem:[#allocation7 + $0x258] sm:$0xff]
    %v128 = vld [vmem:[#allocation7 + $0x260] sm:$0xff]
    %v129 = vld [vmem:[#allocation7 + $0x268] sm:$0xff]
    %v130 = vld [vmem:[#allocation7 + $0x270] sm:$0xff]
    %v131 = vld [vmem:[#allocation7 + $0x278] sm:$0xff]
    %v132 = vld [vmem:[#allocation7 + $0x280] sm:$0xff]
    %v133 = vld [vmem:[#allocation7 + $0x288] sm:$0xff]
    %v134 = vld [vmem:[#allocation7 + $0x290] sm:$0xff]
    %v135 = vld [vmem:[#allocation7 + $0x298] sm:$0xff]
    %v136 = vld [vmem:[#allocation7 + $0x2a0] sm:$0xff]
    %v137 = vld [vmem:[#allocation7 + $0x2a8] sm:$0xff]
    %v138 = vld [vmem:[#allocation7 + $0x2b0] sm:$0xff]
    %v139 = vld [vmem:[#allocation7 + $0x8] sm:$0x1]
    %v140 = vld [vmem:[#allocation7 + $0x90] sm:$0x1]
    %v141 = vld [vmem:[#allocation7 + $0x118] sm:$0x1]
    %v142 = vld [vmem:[#allocation7 + $0x1a8] sm:$0x1]
    %v143 = vld [vmem:[#allocation7 + $0x230] sm:$0x1]
    %v144 = vld [vmem:[#allocation7 + $0x2b8] sm:$0x1]
    %v145 = vld [vmem:[#allocation7 + $0x2c0] sm:$0x1]
    %v146 = vld [vmem:[#allocation2] sm:$0xff]
    %v147 = vld [vmem:[#allocation2 + $0x8] sm:$0xff]
    %v148 = vld [vmem:[#allocation5] sm:$0xff]
    %v149 = vld [vmem:[#allocation5 + $0x8] sm:$0xff]
    %v150 = vpack.c.bf16 %v147, %v146
    %v151 = vpack.c.bf16 %v57, %v57
    %v152 = vlaneseq
    %v153 = vshrl.u32 %v152, 7
    %v154 = vsub.s32 0, %v153
    %v155 = vrot.slane %v139, %v154
    %vm156 = vcmask 64512
    %v158 = vsel %vm156, %v150, 0
    %vm160 = vcmask 1043456
    %v162 = vsel %vm160, %v151, 0
    %164 = vmatprep.subr.bf16.mxu0 0
    %165 = vmatpush1.bf16.msra.mxu0 %v162
    %166 = vmatprep.subr.bf16.mxu0 0
    %167 = vmatpush1.bf16.msra.mxu0 0
    %168 = vmatprep.subr.bf16.mxu0 0
    %169 = vmatpush1.bf16.msra.mxu0 0
    %170 = vmatprep.subr.bf16.mxu0 0
    %171 = vmatpush1.bf16.msra.mxu0 0
    %172 = vmatprep.subr.bf16.mxu0 0
    %173 = vmatpush1.bf16.msra.mxu0 0
    %174 = vmatprep.subr.bf16.mxu0 0
    %175 = vmatpush1.bf16.msra.mxu0 0
    %176 = vmatprep.subr.bf16.mxu0 0
    %177 = vmatpush1.bf16.msra.mxu0 0
    %178 = vmatprep.subr.bf16.mxu0 0
    %179 = vmatpush1.bf16.msra.mxu0 0
    %180 = vmatprep.subr.bf16.mxu0 0
    %181 = vmatpush1.bf16.msra.mxu0 0
    %182 = vmatprep.subr.bf16.mxu0 0
    %183 = vmatpush1.bf16.msra.mxu0 0
    %184 = vmatprep.subr.bf16.mxu0 0
    %185 = vmatpush1.bf16.msra.mxu0 0
    %186 = vmatprep.subr.bf16.mxu0 0
    %187 = vmatpush1.bf16.msra.mxu0 0
    %188 = vmatprep.subr.bf16.mxu0 0
    %189 = vmatpush1.bf16.msra.mxu0 0
    %190 = vmatprep.subr.bf16.mxu0 0
    %191 = vmatpush1.bf16.msra.mxu0 0
    %192 = vmatprep.subr.bf16.mxu0 0
    %193 = vmatpush1.bf16.msra.mxu0 0
    %194 = vmatprep.subr.bf16.mxu0 0
    %195 = vmatpush1.bf16.msra.mxu0 0
    %196 = vmatprep.mubr.bf16.mxu0 0
    %197 = vmatmul.mubr.bf16.gmra.mrb[0].mxu0 %v158
    %v198 = vpop.f32.mrb[0].mxu0
    %v199 = vadd.f32 %v155, %v198
    %v200 = vpop.f32.mrb[0].mxu0
    %v201 = vpop.f32.mrb[0].mxu0
    %v202 = vadd.f32 %v155, %v201
    %v203 = vpop.f32.mrb[0].mxu0
    %204 = vdwg.mxu0
    %v205 = vmax.f32 %v199, 0.0
    %v206 = vmax.f32 %v202, 0.0
    %v207 = vpack.c.bf16 %v206, %v205
    %v208 = vpack.c.bf16 %v59, %v58
    %v209 = vpack.c.bf16 %v61, %v60
    %v210 = vpack.c.bf16 %v63, %v62
    %v211 = vpack.c.bf16 %v65, %v64
    %v212 = vpack.c.bf16 %v67, %v66
    %v213 = vpack.c.bf16 %v69, %v68
    %v214 = vpack.c.bf16 %v71, %v70
    %v215 = vpack.c.bf16 %v73, %v72
    %v216 = vlaneseq
    %v217 = vshrl.u32 %v216, 7
    %v218 = vsub.s32 0, %v217
    %v219 = vrot.slane %v140, %v218
    %220 = vmatprep.subr.bf16.mxu0 0
    %221 = vmatpush1.bf16.msra.mxu0 %v208
    %222 = vmatprep.subr.bf16.mxu0 0
    %223 = vmatpush1.bf16.msra.mxu0 %v209
    %224 = vmatprep.subr.bf16.mxu0 0
    %225 = vmatpush1.bf16.msra.mxu0 %v210
    %226 = vmatprep.subr.bf16.mxu0 0
    %227 = vmatpush1.bf16.msra.mxu0 %v211
    %228 = vmatprep.subr.bf16.mxu0 0
    %229 = vmatpush1.bf16.msra.mxu0 %v212
    %230 = vmatprep.subr.bf16.mxu0 0
    %231 = vmatpush1.bf16.msra.mxu0 %v213
    %232 = vmatprep.subr.bf16.mxu0 0
    %233 = vmatpush1.bf16.msra.mxu0 %v214
    %234 = vmatprep.subr.bf16.mxu0 0
    %235 = vmatpush1.bf16.msra.mxu0 %v215
    %236 = vmatprep.subr.bf16.mxu0 0
    %237 = vmatpush1.bf16.msra.mxu0 0
    %238 = vmatprep.subr.bf16.mxu0 0
    %239 = vmatpush1.bf16.msra.mxu0 0
    %240 = vmatprep.subr.bf16.mxu0 0
    %241 = vmatpush1.bf16.msra.mxu0 0
    %242 = vmatprep.subr.bf16.mxu0 0
    %243 = vmatpush1.bf16.msra.mxu0 0
    %244 = vmatprep.subr.bf16.mxu0 0
    %245 = vmatpush1.bf16.msra.mxu0 0
    %246 = vmatprep.subr.bf16.mxu0 0
    %247 = vmatpush1.bf16.msra.mxu0 0
    %248 = vmatprep.subr.bf16.mxu0 0
    %249 = vmatpush1.bf16.msra.mxu0 0
    %250 = vmatprep.subr.bf16.mxu0 0
    %251 = vmatpush1.bf16.msra.mxu0 0
    %252 = vmatprep.mubr.bf16.mxu0 0
    %253 = vmatmul.mubr.bf16.gmra.mrb[0].mxu0 %v207
    %v254 = vpop.f32.mrb[0].mxu0
    %v255 = vadd.f32 %v219, %v254
    %v256 = vpop.f32.mrb[0].mxu0
    %v257 = vpop.f32.mrb[0].mxu0
    %v258 = vadd.f32 %v219, %v257
    %v259 = vpop.f32.mrb[0].mxu0
    %260 = vdwg.mxu0
    %v261 = vmax.f32 %v255, 0.0
    %v262 = vmax.f32 %v258, 0.0
    %v263 = vpack.c.bf16 %v262, %v261
    %v264 = vpack.c.bf16 %v75, %v74
    %v265 = vpack.c.bf16 %v77, %v76
    %v266 = vpack.c.bf16 %v79, %v78
    %v267 = vpack.c.bf16 %v81, %v80
    %v268 = vpack.c.bf16 %v83, %v82
    %v269 = vpack.c.bf16 %v85, %v84
    %v270 = vpack.c.bf16 %v87, %v86
    %v271 = vpack.c.bf16 %v89, %v88
    %v272 = vlaneseq
    %v273 = vshrl.u32 %v272, 7
    %v274 = vsub.s32 0, %v273
    %v275 = vrot.slane %v141, %v274
    %276 = vmatprep.subr.bf16.mxu0 0
    %277 = vmatpush1.bf16.msra.mxu0 %v264
    %278 = vmatprep.subr.bf16.mxu0 0
    %279 = vmatpush1.bf16.msra.mxu0 %v265
    %280 = vmatprep.subr.bf16.mxu0 0
    %281 = vmatpush1.bf16.msra.mxu0 %v266
    %282 = vmatprep.subr.bf16.mxu0 0
    %283 = vmatpush1.bf16.msra.mxu0 %v267
    %284 = vmatprep.subr.bf16.mxu0 0
    %285 = vmatpush1.bf16.msra.mxu0 %v268
    %286 = vmatprep.subr.bf16.mxu0 0
    %287 = vmatpush1.bf16.msra.mxu0 %v269
    %288 = vmatprep.subr.bf16.mxu0 0
    %289 = vmatpush1.bf16.msra.mxu0 %v270
    %290 = vmatprep.subr.bf16.mxu0 0
    %291 = vmatpush1.bf16.msra.mxu0 %v271
    %292 = vmatprep.subr.bf16.mxu0 0
    %293 = vmatpush1.bf16.msra.mxu0 0
    %294 = vmatprep.subr.bf16.mxu0 0
    %295 = vmatpush1.bf16.msra.mxu0 0
    %296 = vmatprep.subr.bf16.mxu0 0
    %297 = vmatpush1.bf16.msra.mxu0 0
    %298 = vmatprep.subr.bf16.mxu0 0
    %299 = vmatpush1.bf16.msra.mxu0 0
    %300 = vmatprep.subr.bf16.mxu0 0
    %301 = vmatpush1.bf16.msra.mxu0 0
    %302 = vmatprep.subr.bf16.mxu0 0
    %303 = vmatpush1.bf16.msra.mxu0 0
    %304 = vmatprep.subr.bf16.mxu0 0
    %305 = vmatpush1.bf16.msra.mxu0 0
    %306 = vmatprep.subr.bf16.mxu0 0
    %307 = vmatpush1.bf16.msra.mxu0 0
    %308 = vmatprep.mubr.bf16.mxu0 0
    %309 = vmatmul.mubr.bf16.gmra.mrb[0].mxu0 %v263
    %v310 = vpop.f32.mrb[0].mxu0
    %v311 = vadd.f32 %v275, %v310
    %v312 = vpop.f32.mrb[0].mxu0
    %v313 = vpop.f32.mrb[0].mxu0
    %v314 = vadd.f32 %v275, %v313
    %v315 = vpop.f32.mrb[0].mxu0
    %316 = vdwg.mxu0
    %v317 = vrot.slane %v311, 4
    %v318 = vadd.f32 %v311, %v317
    %v319 = vrot.slane %v318, 2
    %v320 = vadd.f32 %v318, %v319
    %v321 = vrot.slane %v320, 1
    %v322 = vadd.f32 %v320, %v321
    %v323 = vrot.slane %v314, 4
    %v324 = vadd.f32 %v314, %v323
    %v325 = vrot.slane %v324, 2
    %v326 = vadd.f32 %v324, %v325
    %v327 = vrot.slane %v326, 1
    %v328 = vadd.f32 %v326, %v327
    %v329 = vrcp.pop 8.0
    %v330 = vmul.f32 %v322, %v329
    %v331 = vmul.f32 %v328, %v329
    %v332 = vpack.c.bf16 %v330, %v330
    %v333 = vpack.c.bf16 %v331, %v331
    %v334 = vpack.c.bf16 %v92, %v91
    %v335 = vpack.c.bf16 %v94, %v93
    %v336 = vpack.c.bf16 %v96, %v95
    %v337 = vpack.c.bf16 %v98, %v97
    %v338 = vpack.c.bf16 %v100, %v99
    %v339 = vpack.c.bf16 %v102, %v101
    %v340 = vpack.c.bf16 %v104, %v103
    %v341 = vpack.c.bf16 %v106, %v105
    %v344 = vunpack.c.l.b16 %v332
    %v345 = vunpack.c.l.b16 %v333
    %vm346 = vcmask 1041409
    %v347 = vsel %vm346, %v345, %v344
    %v348 = vpack.c.b16 %v347, %v347
    %350 = vmatprep.subr.bf16.mxu0 0
    %351 = vmatpush1.bf16.msra.mxu0 %v334
    %352 = vmatprep.subr.bf16.mxu0 0
    %353 = vmatpush1.bf16.msra.mxu0 %v335
    %354 = vmatprep.subr.bf16.mxu0 0
    %355 = vmatpush1.bf16.msra.mxu0 %v336
    %356 = vmatprep.subr.bf16.mxu0 0
    %357 = vmatpush1.bf16.msra.mxu0 %v337
    %358 = vmatprep.subr.bf16.mxu0 0
    %359 = vmatpush1.bf16.msra.mxu0 %v338
    %360 = vmatprep.subr.bf16.mxu0 0
    %361 = vmatpush1.bf16.msra.mxu0 %v339
    %362 = vmatprep.subr.bf16.mxu0 0
    %363 = vmatpush1.bf16.msra.mxu0 %v340
    %364 = vmatprep.subr.bf16.mxu0 0
    %365 = vmatpush1.bf16.msra.mxu0 %v341
    %366 = vmatprep.subr.bf16.mxu0 0
    %367 = vmatpush1.bf16.msra.mxu0 0
    %368 = vmatprep.subr.bf16.mxu0 0
    %369 = vmatpush1.bf16.msra.mxu0 0
    %370 = vmatprep.subr.bf16.mxu0 0
    %371 = vmatpush1.bf16.msra.mxu0 0
    %372 = vmatprep.subr.bf16.mxu0 0
    %373 = vmatpush1.bf16.msra.mxu0 0
    %374 = vmatprep.subr.bf16.mxu0 0
    %375 = vmatpush1.bf16.msra.mxu0 0
    %376 = vmatprep.subr.bf16.mxu0 0
    %377 = vmatpush1.bf16.msra.mxu0 0
    %378 = vmatprep.subr.bf16.mxu0 0
    %379 = vmatpush1.bf16.msra.mxu0 0
    %380 = vmatprep.subr.bf16.mxu0 0
    %381 = vmatpush1.bf16.msra.mxu0 0
    %382 = vmatprep.mubr.bf16.mxu0 0
    %383 = vmatmul.mubr.bf16.gmra.mrb[0].mxu0 %v348
    %v384 = vpop.f32.mrb[0].mxu0
    %v385 = vadd.f32 0.0, %v384
    %v386 = vpop.f32.mrb[0].mxu0
    %v387 = vpop.f32.mrb[0].mxu0
    %v388 = vpop.f32.mrb[0].mxu0
    %389 = vdwg.mxu0
    %v390 = vpack.c.bf16 %v149, %v148
    %v391 = vpack.c.bf16 %v90, %v90
    %v392 = vlaneseq
    %v393 = vshrl.u32 %v392, 7
    %v394 = vsub.s32 0, %v393
    %v395 = vrot.slane %v142, %v394
    %v397 = vsel %vm156, %v390, 0
    %v400 = vsel %vm160, %v391, 0
    %402 = vmatprep.subr.bf16.mxu0 0
    %403 = vmatpush1.bf16.msra.mxu0 %v400
    %404 = vmatprep.subr.bf16.mxu0 0
    %405 = vmatpush1.bf16.msra.mxu0 0
    %406 = vmatprep.subr.bf16.mxu0 0
    %407 = vmatpush1.bf16.msra.mxu0 0
    %408 = vmatprep.subr.bf16.mxu0 0
    %409 = vmatpush1.bf16.msra.mxu0 0
    %410 = vmatprep.subr.bf16.mxu0 0
    %411 = vmatpush1.bf16.msra.mxu0 0
    %412 = vmatprep.subr.bf16.mxu0 0
    %413 = vmatpush1.bf16.msra.mxu0 0
    %414 = vmatprep.subr.bf16.mxu0 0
    %415 = vmatpush1.bf16.msra.mxu0 0
    %416 = vmatprep.subr.bf16.mxu0 0
    %417 = vmatpush1.bf16.msra.mxu0 0
    %418 = vmatprep.subr.bf16.mxu0 0
    %419 = vmatpush1.bf16.msra.mxu0 0
    %420 = vmatprep.subr.bf16.mxu0 0
    %421 = vmatpush1.bf16.msra.mxu0 0
    %422 = vmatprep.subr.bf16.mxu0 0
    %423 = vmatpush1.bf16.msra.mxu0 0
    %424 = vmatprep.subr.bf16.mxu0 0
    %425 = vmatpush1.bf16.msra.mxu0 0
    %426 = vmatprep.subr.bf16.mxu0 0
    %427 = vmatpush1.bf16.msra.mxu0 0
    %428 = vmatprep.subr.bf16.mxu0 0
    %429 = vmatpush1.bf16.msra.mxu0 0
    %430 = vmatprep.subr.bf16.mxu0 0
    %431 = vmatpush1.bf16.msra.mxu0 0
    %432 = vmatprep.subr.bf16.mxu0 0
    %433 = vmatpush1.bf16.msra.mxu0 0
    %434 = vmatprep.mubr.bf16.mxu0 0
    %435 = vmatmul.mubr.bf16.gmra.mrb[0].mxu0 %v397
    %v436 = vpop.f32.mrb[0].mxu0
    %v437 = vadd.f32 %v395, %v436
    %v438 = vpop.f32.mrb[0].mxu0
    %v439 = vpop.f32.mrb[0].mxu0
    %v440 = vadd.f32 %v395, %v439
    %v441 = vpop.f32.mrb[0].mxu0
    %442 = vdwg.mxu0
    %v445 = vunpack.c.l.s4 1966171168
    %v446 = vunpack.c.0.s8 %v445
    %v447 = vlaneseq
    %v448 = vshrl.u32 %v447, 7
    %v449 = vsub.s32 %v446, %v448
    %v450 = vrot.slane %v385, %v449
    %v451 = vcombine.high %v450, %v450
    %v453 = vunpack.c.l.s4 1966171168
    %v454 = vunpack.c.0.s8 %v453
    %v455 = vlaneseq
    %v456 = vshrl.u32 %v455, 7
    %v457 = vsub.s32 %v454, %v456
    %v458 = vrot.slane %v450, %v457
    %v460 = vunpack.c.l.s4 1966171168
    %v461 = vunpack.c.0.s8 %v460
    %v462 = vlaneseq
    %v463 = vshrl.u32 %v462, 7
    %v464 = vsub.s32 %v461, %v463
    %v465 = vrot.slane %v451, %v464
    %v466 = vlaneseq
    %v467 = vshrl.u32 %v466, 7
    %v468 = vsub.s32 0, %v467
    %v469 = vrot.slane %v458, %v468
    %v470 = vlaneseq
    %v471 = vshrl.u32 %v470, 7
    %v472 = vsub.s32 0, %v471
    %v473 = vrot.slane %v465, %v472
    %v476 = vadd.f32 %v437, %v469
    %v477 = vadd.f32 %v440, %v473
    %v478 = vmax.f32 %v476, 0.0
    %v479 = vmax.f32 %v477, 0.0
    %v480 = vpack.c.bf16 %v479, %v478
    %v481 = vpack.c.bf16 %v108, %v107
    %v482 = vpack.c.bf16 %v110, %v109
    %v483 = vpack.c.bf16 %v112, %v111
    %v484 = vpack.c.bf16 %v114, %v113
    %v485 = vpack.c.bf16 %v116, %v115
    %v486 = vpack.c.bf16 %v118, %v117
    %v487 = vpack.c.bf16 %v120, %v119
    %v488 = vpack.c.bf16 %v122, %v121
    %v489 = vlaneseq
    %v490 = vshrl.u32 %v489, 7
    %v491 = vsub.s32 0, %v490
    %v492 = vrot.slane %v143, %v491
    %493 = vmatprep.subr.bf16.mxu0 0
    %494 = vmatpush1.bf16.msra.mxu0 %v481
    %495 = vmatprep.subr.bf16.mxu0 0
    %496 = vmatpush1.bf16.msra.mxu0 %v482
    %497 = vmatprep.subr.bf16.mxu0 0
    %498 = vmatpush1.bf16.msra.mxu0 %v483
    %499 = vmatprep.subr.bf16.mxu0 0
    %500 = vmatpush1.bf16.msra.mxu0 %v484
    %501 = vmatprep.subr.bf16.mxu0 0
    %502 = vmatpush1.bf16.msra.mxu0 %v485
    %503 = vmatprep.subr.bf16.mxu0 0
    %504 = vmatpush1.bf16.msra.mxu0 %v486
    %505 = vmatprep.subr.bf16.mxu0 0
    %506 = vmatpush1.bf16.msra.mxu0 %v487
    %507 = vmatprep.subr.bf16.mxu0 0
    %508 = vmatpush1.bf16.msra.mxu0 %v488
    %509 = vmatprep.subr.bf16.mxu0 0
    %510 = vmatpush1.bf16.msra.mxu0 0
    %511 = vmatprep.subr.bf16.mxu0 0
    %512 = vmatpush1.bf16.msra.mxu0 0
    %513 = vmatprep.subr.bf16.mxu0 0
    %514 = vmatpush1.bf16.msra.mxu0 0
    %515 = vmatprep.subr.bf16.mxu0 0
    %516 = vmatpush1.bf16.msra.mxu0 0
    %517 = vmatprep.subr.bf16.mxu0 0
    %518 = vmatpush1.bf16.msra.mxu0 0
    %519 = vmatprep.subr.bf16.mxu0 0
    %520 = vmatpush1.bf16.msra.mxu0 0
    %521 = vmatprep.subr.bf16.mxu0 0
    %522 = vmatpush1.bf16.msra.mxu0 0
    %523 = vmatprep.subr.bf16.mxu0 0
    %524 = vmatpush1.bf16.msra.mxu0 0
    %525 = vmatprep.mubr.bf16.mxu0 0
    %526 = vmatmul.mubr.bf16.gmra.mrb[0].mxu0 %v480
    %v527 = vpop.f32.mrb[0].mxu0
    %v528 = vadd.f32 %v492, %v527
    %v529 = vpop.f32.mrb[0].mxu0
    %v530 = vpop.f32.mrb[0].mxu0
    %v531 = vadd.f32 %v492, %v530
    %v532 = vpop.f32.mrb[0].mxu0
    %533 = vdwg.mxu0
    %v534 = vmax.f32 %v528, 0.0
    %v535 = vmax.f32 %v531, 0.0
    %v536 = vpack.c.bf16 %v535, %v534
    %v537 = vpack.c.bf16 %v124, %v123
    %v538 = vpack.c.bf16 %v126, %v125
    %v539 = vpack.c.bf16 %v128, %v127
    %v540 = vpack.c.bf16 %v130, %v129
    %v541 = vpack.c.bf16 %v132, %v131
    %v542 = vpack.c.bf16 %v134, %v133
    %v543 = vpack.c.bf16 %v136, %v135
    %v544 = vpack.c.bf16 %v138, %v137
    %v545 = vlaneseq
    %v546 = vshrl.u32 %v545, 7
    %v547 = vsub.s32 0, %v546
    %v548 = vrot.slane %v144, %v547
    %549 = vmatprep.subr.bf16.mxu0 0
    %550 = vmatpush1.bf16.msra.mxu0 %v537
    %551 = vmatprep.subr.bf16.mxu0 0
    %552 = vmatpush1.bf16.msra.mxu0 %v538
    %553 = vmatprep.subr.bf16.mxu0 0
    %554 = vmatpush1.bf16.msra.mxu0 %v539
    %555 = vmatprep.subr.bf16.mxu0 0
    %556 = vmatpush1.bf16.msra.mxu0 %v540
    %557 = vmatprep.subr.bf16.mxu0 0
    %558 = vmatpush1.bf16.msra.mxu0 %v541
    %559 = vmatprep.subr.bf16.mxu0 0
    %560 = vmatpush1.bf16.msra.mxu0 %v542
    %561 = vmatprep.subr.bf16.mxu0 0
    %562 = vmatpush1.bf16.msra.mxu0 %v543
    %563 = vmatprep.subr.bf16.mxu0 0
    %564 = vmatpush1.bf16.msra.mxu0 %v544
    %565 = vmatprep.subr.bf16.mxu0 0
    %566 = vmatpush1.bf16.msra.mxu0 0
    %567 = vmatprep.subr.bf16.mxu0 0
    %568 = vmatpush1.bf16.msra.mxu0 0
    %569 = vmatprep.subr.bf16.mxu0 0
    %570 = vmatpush1.bf16.msra.mxu0 0
    %571 = vmatprep.subr.bf16.mxu0 0
    %572 = vmatpush1.bf16.msra.mxu0 0
    %573 = vmatprep.subr.bf16.mxu0 0
    %574 = vmatpush1.bf16.msra.mxu0 0
    %575 = vmatprep.subr.bf16.mxu0 0
    %576 = vmatpush1.bf16.msra.mxu0 0
    %577 = vmatprep.subr.bf16.mxu0 0
    %578 = vmatpush1.bf16.msra.mxu0 0
    %579 = vmatprep.subr.bf16.mxu0 0
    %580 = vmatpush1.bf16.msra.mxu0 0
    %581 = vmatprep.mubr.bf16.mxu0 0
    %582 = vmatmul.mubr.bf16.gmra.mrb[0].mxu0 %v536
    %v583 = vpop.f32.mrb[0].mxu0
    %v584 = vadd.f32 %v548, %v583
    %v585 = vpop.f32.mrb[0].mxu0
    %v586 = vpop.f32.mrb[0].mxu0
    %v587 = vadd.f32 %v548, %v586
    %v588 = vpop.f32.mrb[0].mxu0
    %589 = vdwg.mxu0
    %vm590 = vcmp.gt.f32.partialorder %v145, 0.5
    %v591 = vmax.f32 %v584, 0.0
    %v592 = vmax.f32 %v587, 0.0
    %v593 = vand.u32 2147483647, %v584
    %v594 = vand.u32 2147483647, %v587
    %v595 = vsub.f32 0.0, %v593
    %v596 = vsub.f32 0.0, %v594
    %v597 = vmul.f32 %v595, 1.442695
    %v598 = vpow.pop %v597
    %v599 = vmul.f32 %v596, 1.442695
    %v600 = vpow.pop %v599
    %v601 = vadd.f32 %v598, 1.0
    %v602 = vlog2.pop %v601
    %v603 = vmul.f32 %v602, 0.6931472
    %v604 = vmul.f32 -0.5, %v598
    %v605 = vadd.f32 %v604, 1.0
    %v606 = vmul.f32 %v605, %v598
    %v607 = vand.u32 2147483647, %v598
    %vm608 = vcmp.lt.f32.partialorder %v607, 0.0004427343
    %v609 = vsel %vm608, %v606, %v603
    %v610 = vadd.f32 %v600, 1.0
    %v611 = vlog2.pop %v610
    %v612 = vmul.f32 %v611, 0.6931472
    %v613 = vmul.f32 -0.5, %v600
    %v614 = vadd.f32 %v613, 1.0
    %v615 = vmul.f32 %v614, %v600
    %v616 = vand.u32 2147483647, %v600
    %vm617 = vcmp.lt.f32.partialorder %v616, 0.0004427343
    %v618 = vsel %vm617, %v615, %v612
    %v619 = vadd.f32 %v591, %v609
    %v620 = vadd.f32 %v592, %v618
    %v621 = vmul.f32 %v619, 0.9
    %v622 = vmul.f32 %v620, 0.9
    %v623 = vadd.f32 %v621, 0.1
    %v624 = vadd.f32 %v622, 0.1
    %v625 = vsel %vm590, 1, 0
    %v626 = vlaneseq
    %v627 = vshrl.u32 %v626, 7
    %v628 = vsub.s32 0, %v627
    %v629 = vrot.slane %v625, %v628
    %vm630 = vcmp.eq.s32.totalorder %v629, 1
    %v631 = vsel %vm630, %v623, %v584
    %v632 = vsel %vm630, %v624, %v587
    %633 = vst [vmem:[#allocation8] sm:$0xff] %v631
    %634 = vst [vmem:[#allocation8 + $0x8] sm:$0xff] %v632
    // Predicated region
    $region26: #{tpu_custom_call.1} parent=1 // pred_check
      _
    $region27: #{tpu_custom_call.1} parent=1 // pred_check_branch
      %636 = sbr.rel (0) target = $region29
    $region28: #{tpu_custom_call.1} parent=1 // pred_region
      %s638 = ssub.s32 256, 256
      %639 = vsyncadd [#allocation4], %s638
      %s640 = sshll.u32 [#allocation8], 4
      %s641 = int_to_ptr.vmem [resolvable:$true] %s640
      %646 = dma.vmem_to_hbm [thread:$0]  %s641, 256, %s3, [#allocation4], 128, 128, 8
    $region29: #{tpu_custom_call.1} parent=1 // pred_fallthru
      _
    // Predicated region
    $region30: #{tpu_custom_call.1} parent=1 // pred_check
      _
    $region31: #{tpu_custom_call.1} parent=1 // pred_check_branch
      %648 = sbr.rel (0) target = $region33
    $region32: #{tpu_custom_call.1} parent=1 // pred_region
      %649 = dma.done [#allocation4], 256
    $region33: #{tpu_custom_call.1} parent=1 // pred_fallthru
      _
    %650 = vsyncpa [#allocation3], 1
    %651 = vsyncpa [#allocation6], 1
    %652 = vsyncpa [#allocation4], 1

// kernel: tpu_custom_call.1
$region0: #{tpu_custom_call.1}
  #allocation0 [shape = 'u32[]', space=smem, size = 0x4, offset = 0x4, fixed_abs, tag = 'smem constant byte address 0x4 - core index']
  #allocation1 [shape = 'u32[144,128]{1,0:T(1,128)}', space=vmem, size = 0x12000, scoped, tag = 'internal scratch']
  %s0 = inlined_call_operand.hbm [shape: f32[2,8,8], index: 0, kind: input, shape index: {}]
  %s1 = inlined_call_operand.hbm [shape: f32[2,8,8], index: 1, kind: input, shape index: {}]
  %s2 = inlined_call_operand.hbm [shape: f32[712,128], index: 2, kind: input, shape index: {}]
  %s3 = inlined_call_operand.hbm [shape: f32[2,8,128], index: 3, kind: output, shape index: {}]
  %s4 = sld [smem:[#allocation0]]
  $region34: #{tpu_custom_call.1} parent=0
    _
  %s6 = ssub.s32 1, %s4
  %s7 = scalar_select 0, %s6, %s4
  $region1: #{tpu_custom_call.1} parent=0
    #allocation2 [shape = 'u8[8192]{0}', space=vmem, size = 0x2000, scoped, tag = 'input window, operand 0, single buffered']
    #allocation3 [shape = 's32[1]{0}', space=sflag, size = 0x4, scoped, tag = 'scoped memory for tpu_custom_call.1']
    #allocation4 [shape = 's32[1]{0}', space=sflag, size = 0x4, scoped, tag = 'scoped memory for tpu_custom_call.1']
    #allocation5 [shape = 'u8[8192]{0}', space=vmem, size = 0x2000, scoped, tag = 'input window, operand 1, single buffered']
    #allocation6 [shape = 's32[1]{0}', space=sflag, size = 0x4, scoped, tag = 'scoped memory for tpu_custom_call.1']
    #allocation7 [shape = 'u8[364544]{0}', space=vmem, size = 0x59000, scoped, tag = 'input window, operand 2, single buffered']
    #allocation8 [shape = 'u8[8192]{0}', space=vmem, size = 0x2000, scoped, tag = 'output window, operand 0, single buffered']
    %8 = vsyncpa [#allocation3], 0
    %9 = vsyncpa [#allocation6], 0
    %10 = vsyncpa [#allocation4], 0
    // Predicated region
    $region2: #{tpu_custom_call.1} parent=1 // pred_check
      _
    $region3: #{tpu_custom_call.1} parent=1 // pred_check_branch
      %12 = sbr.rel (0) target = $region5
    $region4: #{tpu_custom_call.1} parent=1 // pred_region
      %s14 = ssub.s32 256, 256
      %15 = vsyncadd [#allocation3], %s14
      %s16 = sshll.u32 [#allocation2], 4
      %s17 = int_to_ptr.vmem [resolvable:$true] %s16
      %22 = dma.hbm_to_vmem [thread:$0]  %s0, 256, %s17, [#allocation3], 128, 128, 8
    $region5: #{tpu_custom_call.1} parent=1 // pred_fallthru
      _
    // Predicated region
    $region6: #{tpu_custom_call.1} parent=1 // pred_check
      _
    $region7: #{tpu_custom_call.1} parent=1 // pred_check_branch
      %24 = sbr.rel (0) target = $region9
    $region8: #{tpu_custom_call.1} parent=1 // pred_region
      %s26 = ssub.s32 256, 256
      %27 = vsyncadd [#allocation6], %s26
      %s28 = sshll.u32 [#allocation5], 4
      %s29 = int_to_ptr.vmem [resolvable:$true] %s28
      %34 = dma.hbm_to_vmem [thread:$0]  %s1, 256, %s29, [#allocation6], 128, 128, 8
    $region9: #{tpu_custom_call.1} parent=1 // pred_fallthru
      _
    // Predicated region
    $region10: #{tpu_custom_call.1} parent=1 // pred_check
      _
    $region11: #{tpu_custom_call.1} parent=1 // pred_check_branch
      %36 = sbr.rel (0) target = $region13
    $region12: #{tpu_custom_call.1} parent=1 // pred_region
      %s38 = ssub.s32 11392, 11392
      %39 = vsyncadd [#allocation6], %s38
      %s40 = sshll.u32 [#allocation7], 4
      %s41 = int_to_ptr.vmem [resolvable:$true] %s40
      %46 = dma.hbm_to_vmem [thread:$0]  %s2, 11392, %s41, [#allocation6], 128, 128, 8
    $region13: #{tpu_custom_call.1} parent=1 // pred_fallthru
      _
    // Predicated region
    $region14: #{tpu_custom_call.1} parent=1 // pred_check
      _
    $region15: #{tpu_custom_call.1} parent=1 // pred_check_branch
      %48 = sbr.rel (0) target = $region17
    $region16: #{tpu_custom_call.1} parent=1 // pred_region
      %49 = dma.done [#allocation3], 256
    $region17: #{tpu_custom_call.1} parent=1 // pred_fallthru
      _
    // Predicated region
    $region18: #{tpu_custom_call.1} parent=1 // pred_check
      _
    $region19: #{tpu_custom_call.1} parent=1 // pred_check_branch
      %51 = sbr.rel (0) target = $region21
    $region20: #{tpu_custom_call.1} parent=1 // pred_region
      %52 = dma.done [#allocation6], 256
    $region21: #{tpu_custom_call.1} parent=1 // pred_fallthru
      _
    // Predicated region
    $region22: #{tpu_custom_call.1} parent=1 // pred_check
      _
    $region23: #{tpu_custom_call.1} parent=1 // pred_check_branch
      %54 = sbr.rel (0) target = $region25
    $region24: #{tpu_custom_call.1} parent=1 // pred_region
      %55 = dma.done [#allocation6], 11392
    $region25: #{tpu_custom_call.1} parent=1 // pred_fallthru
      _
    %v57 = vld [vmem:[#allocation7] sm:$0xff]
    %v58 = vld [vmem:[#allocation7 + $0x10] sm:$0xff]
    %v59 = vld [vmem:[#allocation7 + $0x18] sm:$0xff]
    %v60 = vld [vmem:[#allocation7 + $0x20] sm:$0xff]
    %v61 = vld [vmem:[#allocation7 + $0x28] sm:$0xff]
    %v62 = vld [vmem:[#allocation7 + $0x30] sm:$0xff]
    %v63 = vld [vmem:[#allocation7 + $0x38] sm:$0xff]
    %v64 = vld [vmem:[#allocation7 + $0x40] sm:$0xff]
    %v65 = vld [vmem:[#allocation7 + $0x48] sm:$0xff]
    %v66 = vld [vmem:[#allocation7 + $0x50] sm:$0xff]
    %v67 = vld [vmem:[#allocation7 + $0x58] sm:$0xff]
    %v68 = vld [vmem:[#allocation7 + $0x60] sm:$0xff]
    %v69 = vld [vmem:[#allocation7 + $0x68] sm:$0xff]
    %v70 = vld [vmem:[#allocation7 + $0x70] sm:$0xff]
    %v71 = vld [vmem:[#allocation7 + $0x78] sm:$0xff]
    %v72 = vld [vmem:[#allocation7 + $0x80] sm:$0xff]
    %v73 = vld [vmem:[#allocation7 + $0x88] sm:$0xff]
    %v74 = vld [vmem:[#allocation7 + $0x98] sm:$0xff]
    %v75 = vld [vmem:[#allocation7 + $0xa0] sm:$0xff]
    %v76 = vld [vmem:[#allocation7 + $0xa8] sm:$0xff]
    %v77 = vld [vmem:[#allocation7 + $0xb0] sm:$0xff]
    %v78 = vld [vmem:[#allocation7 + $0xb8] sm:$0xff]
    %v79 = vld [vmem:[#allocation7 + $0xc0] sm:$0xff]
    %v80 = vld [vmem:[#allocation7 + $0xc8] sm:$0xff]
    %v81 = vld [vmem:[#allocation7 + $0xd0] sm:$0xff]
    %v82 = vld [vmem:[#allocation7 + $0xd8] sm:$0xff]
    %v83 = vld [vmem:[#allocation7 + $0xe0] sm:$0xff]
    %v84 = vld [vmem:[#allocation7 + $0xe8] sm:$0xff]
    %v85 = vld [vmem:[#allocation7 + $0xf0] sm:$0xff]
    %v86 = vld [vmem:[#allocation7 + $0xf8] sm:$0xff]
    %v87 = vld [vmem:[#allocation7 + $0x100] sm:$0xff]
    %v88 = vld [vmem:[#allocation7 + $0x108] sm:$0xff]
    %v89 = vld [vmem:[#allocation7 + $0x110] sm:$0xff]
    %v90 = vld [vmem:[#allocation7 + $0x120] sm:$0xff]
    %v91 = vld [vmem:[#allocation7 + $0x128] sm:$0xff]
    %v92 = vld [vmem:[#allocation7 + $0x130] sm:$0xff]
    %v93 = vld [vmem:[#allocation7 + $0x138] sm:$0xff]
    %v94 = vld [vmem:[#allocation7 + $0x140] sm:$0xff]
    %v95 = vld [vmem:[#allocation7 + $0x148] sm:$0xff]
    %v96 = vld [vmem:[#allocation7 + $0x150] sm:$0xff]
    %v97 = vld [vmem:[#allocation7 + $0x158] sm:$0xff]
    %v98 = vld [vmem:[#allocation7 + $0x160] sm:$0xff]
    %v99 = vld [vmem:[#allocation7 + $0x168] sm:$0xff]
    %v100 = vld [vmem:[#allocation7 + $0x170] sm:$0xff]
    %v101 = vld [vmem:[#allocation7 + $0x178] sm:$0xff]
    %v102 = vld [vmem:[#allocation7 + $0x180] sm:$0xff]
    %v103 = vld [vmem:[#allocation7 + $0x188] sm:$0xff]
    %v104 = vld [vmem:[#allocation7 + $0x190] sm:$0xff]
    %v105 = vld [vmem:[#allocation7 + $0x198] sm:$0xff]
    %v106 = vld [vmem:[#allocation7 + $0x1a0] sm:$0xff]
    %v107 = vld [vmem:[#allocation7 + $0x1b0] sm:$0xff]
    %v108 = vld [vmem:[#allocation7 + $0x1b8] sm:$0xff]
    %v109 = vld [vmem:[#allocation7 + $0x1c0] sm:$0xff]
    %v110 = vld [vmem:[#allocation7 + $0x1c8] sm:$0xff]
    %v111 = vld [vmem:[#allocation7 + $0x1d0] sm:$0xff]
    %v112 = vld [vmem:[#allocation7 + $0x1d8] sm:$0xff]
    %v113 = vld [vmem:[#allocation7 + $0x1e0] sm:$0xff]
    %v114 = vld [vmem:[#allocation7 + $0x1e8] sm:$0xff]
    %v115 = vld [vmem:[#allocation7 + $0x1f0] sm:$0xff]
    %v116 = vld [vmem:[#allocation7 + $0x1f8] sm:$0xff]
    %v117 = vld [vmem:[#allocation7 + $0x200] sm:$0xff]
    %v118 = vld [vmem:[#allocation7 + $0x208] sm:$0xff]
    %v119 = vld [vmem:[#allocation7 + $0x210] sm:$0xff]
    %v120 = vld [vmem:[#allocation7 + $0x218] sm:$0xff]
    %v121 = vld [vmem:[#allocation7 + $0x220] sm:$0xff]
    %v122 = vld [vmem:[#allocation7 + $0x228] sm:$0xff]
    %v123 = vld [vmem:[#allocation7 + $0x238] sm:$0xff]
    %v124 = vld [vmem:[#allocation7 + $0x240] sm:$0xff]
    %v125 = vld [vmem:[#allocation7 + $0x248] sm:$0xff]
    %v126 = vld [vmem:[#allocation7 + $0x250] sm:$0xff]
    %v127 = vld [vmem:[#allocation7 + $0x258] sm:$0xff]
    %v128 = vld [vmem:[#allocation7 + $0x260] sm:$0xff]
    %v129 = vld [vmem:[#allocation7 + $0x268] sm:$0xff]
    %v130 = vld [vmem:[#allocation7 + $0x270] sm:$0xff]
    %v131 = vld [vmem:[#allocation7 + $0x278] sm:$0xff]
    %v132 = vld [vmem:[#allocation7 + $0x280] sm:$0xff]
    %v133 = vld [vmem:[#allocation7 + $0x288] sm:$0xff]
    %v134 = vld [vmem:[#allocation7 + $0x290] sm:$0xff]
    %v135 = vld [vmem:[#allocation7 + $0x298] sm:$0xff]
    %v136 = vld [vmem:[#allocation7 + $0x2a0] sm:$0xff]
    %v137 = vld [vmem:[#allocation7 + $0x2a8] sm:$0xff]
    %v138 = vld [vmem:[#allocation7 + $0x2b0] sm:$0xff]
    %v139 = vld [vmem:[#allocation7 + $0x8] sm:$0x1]
    %v140 = vld [vmem:[#allocation7 + $0x90] sm:$0x1]
    %v141 = vld [vmem:[#allocation7 + $0x118] sm:$0x1]
    %v142 = vld [vmem:[#allocation7 + $0x1a8] sm:$0x1]
    %v143 = vld [vmem:[#allocation7 + $0x230] sm:$0x1]
    %v144 = vld [vmem:[#allocation7 + $0x2b8] sm:$0x1]
    %v145 = vld [vmem:[#allocation7 + $0x2c0] sm:$0x1]
    %v146 = vld [vmem:[#allocation2] sm:$0xff]
    %v147 = vld [vmem:[#allocation2 + $0x8] sm:$0xff]
    %v148 = vld [vmem:[#allocation5] sm:$0xff]
    %v149 = vld [vmem:[#allocation5 + $0x8] sm:$0xff]
    %v150 = vpack.c.bf16 %v147, %v146
    %v151 = vpack.c.bf16 %v57, %v57
    %v152 = vlaneseq
    %v153 = vshrl.u32 %v152, 7
    %v154 = vsub.s32 0, %v153
    %v155 = vrot.slane %v139, %v154
    %vm156 = vcmask 64512
    %v158 = vsel %vm156, %v150, 0
    %vm160 = vcmask 1043456
    %v162 = vsel %vm160, %v151, 0
    %164 = vmatprep.subr.bf16.mxu0 0
    %165 = vmatpush1.bf16.msra.mxu0 %v162
    %166 = vmatprep.subr.bf16.mxu0 0
    %167 = vmatpush1.bf16.msra.mxu0 0
    %168 = vmatprep.subr.bf16.mxu0 0
    %169 = vmatpush1.bf16.msra.mxu0 0
    %170 = vmatprep.subr.bf16.mxu0 0
    %171 = vmatpush1.bf16.msra.mxu0 0
    %172 = vmatprep.subr.bf16.mxu0 0
    %173 = vmatpush1.bf16.msra.mxu0 0
    %174 = vmatprep.subr.bf16.mxu0 0
    %175 = vmatpush1.bf16.msra.mxu0 0
    %176 = vmatprep.subr.bf16.mxu0 0
    %177 = vmatpush1.bf16.msra.mxu0 0
    %178 = vmatprep.subr.bf16.mxu0 0
    %179 = vmatpush1.bf16.msra.mxu0 0
    %180 = vmatprep.subr.bf16.mxu0 0
    %181 = vmatpush1.bf16.msra.mxu0 0
    %182 = vmatprep.subr.bf16.mxu0 0
    %183 = vmatpush1.bf16.msra.mxu0 0
    %184 = vmatprep.subr.bf16.mxu0 0
    %185 = vmatpush1.bf16.msra.mxu0 0
    %186 = vmatprep.subr.bf16.mxu0 0
    %187 = vmatpush1.bf16.msra.mxu0 0
    %188 = vmatprep.subr.bf16.mxu0 0
    %189 = vmatpush1.bf16.msra.mxu0 0
    %190 = vmatprep.subr.bf16.mxu0 0
    %191 = vmatpush1.bf16.msra.mxu0 0
    %192 = vmatprep.subr.bf16.mxu0 0
    %193 = vmatpush1.bf16.msra.mxu0 0
    %194 = vmatprep.subr.bf16.mxu0 0
    %195 = vmatpush1.bf16.msra.mxu0 0
    %196 = vmatprep.mubr.bf16.mxu0 0
    %197 = vmatmul.mubr.bf16.gmra.mrb[0].mxu0 %v158
    %v198 = vpop.f32.mrb[0].mxu0
    %v199 = vadd.f32 %v155, %v198
    %v200 = vpop.f32.mrb[0].mxu0
    %v201 = vpop.f32.mrb[0].mxu0
    %v202 = vadd.f32 %v155, %v201
    %v203 = vpop.f32.mrb[0].mxu0
    %204 = vdwg.mxu0
    %v205 = vmax.f32 %v199, 0.0
    %v206 = vmax.f32 %v202, 0.0
    %v207 = vpack.c.bf16 %v206, %v205
    %v208 = vpack.c.bf16 %v59, %v58
    %v209 = vpack.c.bf16 %v61, %v60
    %v210 = vpack.c.bf16 %v63, %v62
    %v211 = vpack.c.bf16 %v65, %v64
    %v212 = vpack.c.bf16 %v67, %v66
    %v213 = vpack.c.bf16 %v69, %v68
    %v214 = vpack.c.bf16 %v71, %v70
    %v215 = vpack.c.bf16 %v73, %v72
    %v216 = vlaneseq
    %v217 = vshrl.u32 %v216, 7
    %v218 = vsub.s32 0, %v217
    %v219 = vrot.slane %v140, %v218
    %220 = vmatprep.subr.bf16.mxu0 0
    %221 = vmatpush1.bf16.msra.mxu0 %v208
    %222 = vmatprep.subr.bf16.mxu0 0
    %223 = vmatpush1.bf16.msra.mxu0 %v209
    %224 = vmatprep.subr.bf16.mxu0 0
    %225 = vmatpush1.bf16.msra.mxu0 %v210
    %226 = vmatprep.subr.bf16.mxu0 0
    %227 = vmatpush1.bf16.msra.mxu0 %v211
    %228 = vmatprep.subr.bf16.mxu0 0
    %229 = vmatpush1.bf16.msra.mxu0 %v212
    %230 = vmatprep.subr.bf16.mxu0 0
    %231 = vmatpush1.bf16.msra.mxu0 %v213
    %232 = vmatprep.subr.bf16.mxu0 0
    %233 = vmatpush1.bf16.msra.mxu0 %v214
    %234 = vmatprep.subr.bf16.mxu0 0
    %235 = vmatpush1.bf16.msra.mxu0 %v215
    %236 = vmatprep.subr.bf16.mxu0 0
    %237 = vmatpush1.bf16.msra.mxu0 0
    %238 = vmatprep.subr.bf16.mxu0 0
    %239 = vmatpush1.bf16.msra.mxu0 0
    %240 = vmatprep.subr.bf16.mxu0 0
    %241 = vmatpush1.bf16.msra.mxu0 0
    %242 = vmatprep.subr.bf16.mxu0 0
    %243 = vmatpush1.bf16.msra.mxu0 0
    %244 = vmatprep.subr.bf16.mxu0 0
    %245 = vmatpush1.bf16.msra.mxu0 0
    %246 = vmatprep.subr.bf16.mxu0 0
    %247 = vmatpush1.bf16.msra.mxu0 0
    %248 = vmatprep.subr.bf16.mxu0 0
    %249 = vmatpush1.bf16.msra.mxu0 0
    %250 = vmatprep.subr.bf16.mxu0 0
    %251 = vmatpush1.bf16.msra.mxu0 0
    %252 = vmatprep.mubr.bf16.mxu0 0
    %253 = vmatmul.mubr.bf16.gmra.mrb[0].mxu0 %v207
    %v254 = vpop.f32.mrb[0].mxu0
    %v255 = vadd.f32 %v219, %v254
    %v256 = vpop.f32.mrb[0].mxu0
    %v257 = vpop.f32.mrb[0].mxu0
    %v258 = vadd.f32 %v219, %v257
    %v259 = vpop.f32.mrb[0].mxu0
    %260 = vdwg.mxu0
    %v261 = vmax.f32 %v255, 0.0
    %v262 = vmax.f32 %v258, 0.0
    %v263 = vpack.c.bf16 %v262, %v261
    %v264 = vpack.c.bf16 %v75, %v74
    %v265 = vpack.c.bf16 %v77, %v76
    %v266 = vpack.c.bf16 %v79, %v78
    %v267 = vpack.c.bf16 %v81, %v80
    %v268 = vpack.c.bf16 %v83, %v82
    %v269 = vpack.c.bf16 %v85, %v84
    %v270 = vpack.c.bf16 %v87, %v86
    %v271 = vpack.c.bf16 %v89, %v88
    %v272 = vlaneseq
    %v273 = vshrl.u32 %v272, 7
    %v274 = vsub.s32 0, %v273
    %v275 = vrot.slane %v141, %v274
    %276 = vmatprep.subr.bf16.mxu0 0
    %277 = vmatpush1.bf16.msra.mxu0 %v264
    %278 = vmatprep.subr.bf16.mxu0 0
    %279 = vmatpush1.bf16.msra.mxu0 %v265
    %280 = vmatprep.subr.bf16.mxu0 0
    %281 = vmatpush1.bf16.msra.mxu0 %v266
    %282 = vmatprep.subr.bf16.mxu0 0
    %283 = vmatpush1.bf16.msra.mxu0 %v267
    %284 = vmatprep.subr.bf16.mxu0 0
    %285 = vmatpush1.bf16.msra.mxu0 %v268
    %286 = vmatprep.subr.bf16.mxu0 0
    %287 = vmatpush1.bf16.msra.mxu0 %v269
    %288 = vmatprep.subr.bf16.mxu0 0
    %289 = vmatpush1.bf16.msra.mxu0 %v270
    %290 = vmatprep.subr.bf16.mxu0 0
    %291 = vmatpush1.bf16.msra.mxu0 %v271
    %292 = vmatprep.subr.bf16.mxu0 0
    %293 = vmatpush1.bf16.msra.mxu0 0
    %294 = vmatprep.subr.bf16.mxu0 0
    %295 = vmatpush1.bf16.msra.mxu0 0
    %296 = vmatprep.subr.bf16.mxu0 0
    %297 = vmatpush1.bf16.msra.mxu0 0
    %298 = vmatprep.subr.bf16.mxu0 0
    %299 = vmatpush1.bf16.msra.mxu0 0
    %300 = vmatprep.subr.bf16.mxu0 0
    %301 = vmatpush1.bf16.msra.mxu0 0
    %302 = vmatprep.subr.bf16.mxu0 0
    %303 = vmatpush1.bf16.msra.mxu0 0
    %304 = vmatprep.subr.bf16.mxu0 0
    %305 = vmatpush1.bf16.msra.mxu0 0
    %306 = vmatprep.subr.bf16.mxu0 0
    %307 = vmatpush1.bf16.msra.mxu0 0
    %308 = vmatprep.mubr.bf16.mxu0 0
    %309 = vmatmul.mubr.bf16.gmra.mrb[0].mxu0 %v263
    %v310 = vpop.f32.mrb[0].mxu0
    %v311 = vadd.f32 %v275, %v310
    %v312 = vpop.f32.mrb[0].mxu0
    %v313 = vpop.f32.mrb[0].mxu0
    %v314 = vadd.f32 %v275, %v313
    %v315 = vpop.f32.mrb[0].mxu0
    %316 = vdwg.mxu0
    %v317 = vrot.slane %v311, 4
    %v318 = vadd.f32 %v311, %v317
    %v319 = vrot.slane %v318, 2
    %v320 = vadd.f32 %v318, %v319
    %v321 = vrot.slane %v320, 1
    %v322 = vadd.f32 %v320, %v321
    %v323 = vrot.slane %v314, 4
    %v324 = vadd.f32 %v314, %v323
    %v325 = vrot.slane %v324, 2
    %v326 = vadd.f32 %v324, %v325
    %v327 = vrot.slane %v326, 1
    %v328 = vadd.f32 %v326, %v327
    %v329 = vrcp.pop 8.0
    %v330 = vmul.f32 %v322, %v329
    %v331 = vmul.f32 %v328, %v329
    %v332 = vpack.c.bf16 %v330, %v330
    %v333 = vpack.c.bf16 %v331, %v331
    %v334 = vpack.c.bf16 %v92, %v91
    %v335 = vpack.c.bf16 %v94, %v93
    %v336 = vpack.c.bf16 %v96, %v95
    %v337 = vpack.c.bf16 %v98, %v97
    %v338 = vpack.c.bf16 %v100, %v99
    %v339 = vpack.c.bf16 %v102, %v101
    %v340 = vpack.c.bf16 %v104, %v103
    %v341 = vpack.c.bf16 %v106, %v105
    %v344 = vunpack.c.l.b16 %v332
    %v345 = vunpack.c.l.b16 %v333
    %vm346 = vcmask 1041409
    %v347 = vsel %vm346, %v345, %v344
    %v348 = vpack.c.b16 %v347, %v347
    %350 = vmatprep.subr.bf16.mxu0 0
    %351 = vmatpush1.bf16.msra.mxu0 %v334
    %352 = vmatprep.subr.bf16.mxu0 0
    %353 = vmatpush1.bf16.msra.mxu0 %v335
    %354 = vmatprep.subr.bf16.mxu0 0
    %355 = vmatpush1.bf16.msra.mxu0 %v336
    %356 = vmatprep.subr.bf16.mxu0 0
    %357 = vmatpush1.bf16.msra.mxu0 %v337
    %358 = vmatprep.subr.bf16.mxu0 0
    %359 = vmatpush1.bf16.msra.mxu0 %v338
    %360 = vmatprep.subr.bf16.mxu0 0
    %361 = vmatpush1.bf16.msra.mxu0 %v339
    %362 = vmatprep.subr.bf16.mxu0 0
    %363 = vmatpush1.bf16.msra.mxu0 %v340
    %364 = vmatprep.subr.bf16.mxu0 0
    %365 = vmatpush1.bf16.msra.mxu0 %v341
    %366 = vmatprep.subr.bf16.mxu0 0
    %367 = vmatpush1.bf16.msra.mxu0 0
    %368 = vmatprep.subr.bf16.mxu0 0
    %369 = vmatpush1.bf16.msra.mxu0 0
    %370 = vmatprep.subr.bf16.mxu0 0
    %371 = vmatpush1.bf16.msra.mxu0 0
    %372 = vmatprep.subr.bf16.mxu0 0
    %373 = vmatpush1.bf16.msra.mxu0 0
    %374 = vmatprep.subr.bf16.mxu0 0
    %375 = vmatpush1.bf16.msra.mxu0 0
    %376 = vmatprep.subr.bf16.mxu0 0
    %377 = vmatpush1.bf16.msra.mxu0 0
    %378 = vmatprep.subr.bf16.mxu0 0
    %379 = vmatpush1.bf16.msra.mxu0 0
    %380 = vmatprep.subr.bf16.mxu0 0
    %381 = vmatpush1.bf16.msra.mxu0 0
    %382 = vmatprep.mubr.bf16.mxu0 0
    %383 = vmatmul.mubr.bf16.gmra.mrb[0].mxu0 %v348
    %v384 = vpop.f32.mrb[0].mxu0
    %v385 = vadd.f32 0.0, %v384
    %v386 = vpop.f32.mrb[0].mxu0
    %v387 = vpop.f32.mrb[0].mxu0
    %v388 = vpop.f32.mrb[0].mxu0
    %389 = vdwg.mxu0
    %v390 = vpack.c.bf16 %v149, %v148
    %v391 = vpack.c.bf16 %v90, %v90
    %v392 = vlaneseq
    %v393 = vshrl.u32 %v392, 7
    %v394 = vsub.s32 0, %v393
    %v395 = vrot.slane %v142, %v394
    %v397 = vsel %vm156, %v390, 0
    %v400 = vsel %vm160, %v391, 0
    %402 = vmatprep.subr.bf16.mxu0 0
    %403 = vmatpush1.bf16.msra.mxu0 %v400
    %404 = vmatprep.subr.bf16.mxu0 0
    %405 = vmatpush1.bf16.msra.mxu0 0
    %406 = vmatprep.subr.bf16.mxu0 0
    %407 = vmatpush1.bf16.msra.mxu0 0
    %408 = vmatprep.subr.bf16.mxu0 0
    %409 = vmatpush1.bf16.msra.mxu0 0
    %410 = vmatprep.subr.bf16.mxu0 0
    %411 = vmatpush1.bf16.msra.mxu0 0
    %412 = vmatprep.subr.bf16.mxu0 0
    %413 = vmatpush1.bf16.msra.mxu0 0
    %414 = vmatprep.subr.bf16.mxu0 0
    %415 = vmatpush1.bf16.msra.mxu0 0
    %416 = vmatprep.subr.bf16.mxu0 0
    %417 = vmatpush1.bf16.msra.mxu0 0
    %418 = vmatprep.subr.bf16.mxu0 0
    %419 = vmatpush1.bf16.msra.mxu0 0
    %420 = vmatprep.subr.bf16.mxu0 0
    %421 = vmatpush1.bf16.msra.mxu0 0
    %422 = vmatprep.subr.bf16.mxu0 0
    %423 = vmatpush1.bf16.msra.mxu0 0
    %424 = vmatprep.subr.bf16.mxu0 0
    %425 = vmatpush1.bf16.msra.mxu0 0
    %426 = vmatprep.subr.bf16.mxu0 0
    %427 = vmatpush1.bf16.msra.mxu0 0
    %428 = vmatprep.subr.bf16.mxu0 0
    %429 = vmatpush1.bf16.msra.mxu0 0
    %430 = vmatprep.subr.bf16.mxu0 0
    %431 = vmatpush1.bf16.msra.mxu0 0
    %432 = vmatprep.subr.bf16.mxu0 0
    %433 = vmatpush1.bf16.msra.mxu0 0
    %434 = vmatprep.mubr.bf16.mxu0 0
    %435 = vmatmul.mubr.bf16.gmra.mrb[0].mxu0 %v397
    %v436 = vpop.f32.mrb[0].mxu0
    %v437 = vadd.f32 %v395, %v436
    %v438 = vpop.f32.mrb[0].mxu0
    %v439 = vpop.f32.mrb[0].mxu0
    %v440 = vadd.f32 %v395, %v439
    %v441 = vpop.f32.mrb[0].mxu0
    %442 = vdwg.mxu0
    %v445 = vunpack.c.l.s4 1966171168
    %v446 = vunpack.c.0.s8 %v445
    %v447 = vlaneseq
    %v448 = vshrl.u32 %v447, 7
    %v449 = vsub.s32 %v446, %v448
    %v450 = vrot.slane %v385, %v449
    %v451 = vcombine.high %v450, %v450
    %v453 = vunpack.c.l.s4 1966171168
    %v454 = vunpack.c.0.s8 %v453
    %v455 = vlaneseq
    %v456 = vshrl.u32 %v455, 7
    %v457 = vsub.s32 %v454, %v456
    %v458 = vrot.slane %v450, %v457
    %v460 = vunpack.c.l.s4 1966171168
    %v461 = vunpack.c.0.s8 %v460
    %v462 = vlaneseq
    %v463 = vshrl.u32 %v462, 7
    %v464 = vsub.s32 %v461, %v463
    %v465 = vrot.slane %v451, %v464
    %v466 = vlaneseq
    %v467 = vshrl.u32 %v466, 7
    %v468 = vsub.s32 0, %v467
    %v469 = vrot.slane %v458, %v468
    %v470 = vlaneseq
    %v471 = vshrl.u32 %v470, 7
    %v472 = vsub.s32 0, %v471
    %v473 = vrot.slane %v465, %v472
    %v476 = vadd.f32 %v437, %v469
    %v477 = vadd.f32 %v440, %v473
    %v478 = vmax.f32 %v476, 0.0
    %v479 = vmax.f32 %v477, 0.0
    %v480 = vpack.c.bf16 %v479, %v478
    %v481 = vpack.c.bf16 %v108, %v107
    %v482 = vpack.c.bf16 %v110, %v109
    %v483 = vpack.c.bf16 %v112, %v111
    %v484 = vpack.c.bf16 %v114, %v113
    %v485 = vpack.c.bf16 %v116, %v115
    %v486 = vpack.c.bf16 %v118, %v117
    %v487 = vpack.c.bf16 %v120, %v119
    %v488 = vpack.c.bf16 %v122, %v121
    %v489 = vlaneseq
    %v490 = vshrl.u32 %v489, 7
    %v491 = vsub.s32 0, %v490
    %v492 = vrot.slane %v143, %v491
    %493 = vmatprep.subr.bf16.mxu0 0
    %494 = vmatpush1.bf16.msra.mxu0 %v481
    %495 = vmatprep.subr.bf16.mxu0 0
    %496 = vmatpush1.bf16.msra.mxu0 %v482
    %497 = vmatprep.subr.bf16.mxu0 0
    %498 = vmatpush1.bf16.msra.mxu0 %v483
    %499 = vmatprep.subr.bf16.mxu0 0
    %500 = vmatpush1.bf16.msra.mxu0 %v484
    %501 = vmatprep.subr.bf16.mxu0 0
    %502 = vmatpush1.bf16.msra.mxu0 %v485
    %503 = vmatprep.subr.bf16.mxu0 0
    %504 = vmatpush1.bf16.msra.mxu0 %v486
    %505 = vmatprep.subr.bf16.mxu0 0
    %506 = vmatpush1.bf16.msra.mxu0 %v487
    %507 = vmatprep.subr.bf16.mxu0 0
    %508 = vmatpush1.bf16.msra.mxu0 %v488
    %509 = vmatprep.subr.bf16.mxu0 0
    %510 = vmatpush1.bf16.msra.mxu0 0
    %511 = vmatprep.subr.bf16.mxu0 0
    %512 = vmatpush1.bf16.msra.mxu0 0
    %513 = vmatprep.subr.bf16.mxu0 0
    %514 = vmatpush1.bf16.msra.mxu0 0
    %515 = vmatprep.subr.bf16.mxu0 0
    %516 = vmatpush1.bf16.msra.mxu0 0
    %517 = vmatprep.subr.bf16.mxu0 0
    %518 = vmatpush1.bf16.msra.mxu0 0
    %519 = vmatprep.subr.bf16.mxu0 0
    %520 = vmatpush1.bf16.msra.mxu0 0
    %521 = vmatprep.subr.bf16.mxu0 0
    %522 = vmatpush1.bf16.msra.mxu0 0
    %523 = vmatprep.subr.bf16.mxu0 0
    %524 = vmatpush1.bf16.msra.mxu0 0
    %525 = vmatprep.mubr.bf16.mxu0 0
    %526 = vmatmul.mubr.bf16.gmra.mrb[0].mxu0 %v480
    %v527 = vpop.f32.mrb[0].mxu0
    %v528 = vadd.f32 %v492, %v527
    %v529 = vpop.f32.mrb[0].mxu0
    %v530 = vpop.f32.mrb[0].mxu0
    %v531 = vadd.f32 %v492, %v530
    %v532 = vpop.f32.mrb[0].mxu0
    %533 = vdwg.mxu0
    %v534 = vmax.f32 %v528, 0.0
    %v535 = vmax.f32 %v531, 0.0
    %v536 = vpack.c.bf16 %v535, %v534
    %v537 = vpack.c.bf16 %v124, %v123
    %v538 = vpack.c.bf16 %v126, %v125
    %v539 = vpack.c.bf16 %v128, %v127
    %v540 = vpack.c.bf16 %v130, %v129
    %v541 = vpack.c.bf16 %v132, %v131
    %v542 = vpack.c.bf16 %v134, %v133
    %v543 = vpack.c.bf16 %v136, %v135
    %v544 = vpack.c.bf16 %v138, %v137
    %v545 = vlaneseq
    %v546 = vshrl.u32 %v545, 7
    %v547 = vsub.s32 0, %v546
    %v548 = vrot.slane %v144, %v547
    %549 = vmatprep.subr.bf16.mxu0 0
    %550 = vmatpush1.bf16.msra.mxu0 %v537
    %551 = vmatprep.subr.bf16.mxu0 0
    %552 = vmatpush1.bf16.msra.mxu0 %v538
    %553 = vmatprep.subr.bf16.mxu0 0
    %554 = vmatpush1.bf16.msra.mxu0 %v539
    %555 = vmatprep.subr.bf16.mxu0 0
    %556 = vmatpush1.bf16.msra.mxu0 %v540
    %557 = vmatprep.subr.bf16.mxu0 0
    %558 = vmatpush1.bf16.msra.mxu0 %v541
    %559 = vmatprep.subr.bf16.mxu0 0
    %560 = vmatpush1.bf16.msra.mxu0 %v542
    %561 = vmatprep.subr.bf16.mxu0 0
    %562 = vmatpush1.bf16.msra.mxu0 %v543
    %563 = vmatprep.subr.bf16.mxu0 0
    %564 = vmatpush1.bf16.msra.mxu0 %v544
    %565 = vmatprep.subr.bf16.mxu0 0
    %566 = vmatpush1.bf16.msra.mxu0 0
    %567 = vmatprep.subr.bf16.mxu0 0
    %568 = vmatpush1.bf16.msra.mxu0 0
    %569 = vmatprep.subr.bf16.mxu0 0
    %570 = vmatpush1.bf16.msra.mxu0 0
    %571 = vmatprep.subr.bf16.mxu0 0
    %572 = vmatpush1.bf16.msra.mxu0 0
    %573 = vmatprep.subr.bf16.mxu0 0
    %574 = vmatpush1.bf16.msra.mxu0 0
    %575 = vmatprep.subr.bf16.mxu0 0
    %576 = vmatpush1.bf16.msra.mxu0 0
    %577 = vmatprep.subr.bf16.mxu0 0
    %578 = vmatpush1.bf16.msra.mxu0 0
    %579 = vmatprep.subr.bf16.mxu0 0
    %580 = vmatpush1.bf16.msra.mxu0 0
    %581 = vmatprep.mubr.bf16.mxu0 0
    %582 = vmatmul.mubr.bf16.gmra.mrb[0].mxu0 %v536
    %v583 = vpop.f32.mrb[0].mxu0
    %v584 = vadd.f32 %v548, %v583
    %v585 = vpop.f32.mrb[0].mxu0
    %v586 = vpop.f32.mrb[0].mxu0
    %v587 = vadd.f32 %v548, %v586
    %v588 = vpop.f32.mrb[0].mxu0
    %589 = vdwg.mxu0
    %vm590 = vcmp.gt.f32.partialorder %v145, 0.5
    %v591 = vmax.f32 %v584, 0.0
    %v592 = vmax.f32 %v587, 0.0
    %v593 = vand.u32 2147483647, %v584
    %v594 = vand.u32 2147483647, %v587
    %v595 = vsub.f32 0.0, %v593
    %v596 = vsub.f32 0.0, %v594
    %v597 = vmul.f32 %v595, 1.442695
    %v598 = vpow.pop %v597
    %v599 = vmul.f32 %v596, 1.442695
    %v600 = vpow.pop %v599
    %v601 = vadd.f32 %v598, 1.0
    %v602 = vlog2.pop %v601
    %v603 = vmul.f32 %v602, 0.6931472
    %v604 = vmul.f32 -0.5, %v598
    %v605 = vadd.f32 %v604, 1.0
    %v606 = vmul.f32 %v605, %v598
    %v607 = vand.u32 2147483647, %v598
    %vm608 = vcmp.lt.f32.partialorder %v607, 0.0004427343
    %v609 = vsel %vm608, %v606, %v603
    %v610 = vadd.f32 %v600, 1.0
    %v611 = vlog2.pop %v610
    %v612 = vmul.f32 %v611, 0.6931472
    %v613 = vmul.f32 -0.5, %v600
    %v614 = vadd.f32 %v613, 1.0
    %v615 = vmul.f32 %v614, %v600
    %v616 = vand.u32 2147483647, %v600
    %vm617 = vcmp.lt.f32.partialorder %v616, 0.0004427343
    %v618 = vsel %vm617, %v615, %v612
    %v619 = vadd.f32 %v591, %v609
    %v620 = vadd.f32 %v592, %v618
    %v621 = vmul.f32 %v619, 0.9
    %v622 = vmul.f32 %v620, 0.9
    %v623 = vadd.f32 %v621, 0.1
    %v624 = vadd.f32 %v622, 0.1
    %v625 = vsel %vm590, 1, 0
    %v626 = vlaneseq
    %v627 = vshrl.u32 %v626, 7
    %v628 = vsub.s32 0, %v627
    %v629 = vrot.slane %v625, %v628
    %vm630 = vcmp.eq.s32.totalorder %v629, 1
    %v631 = vsel %vm630, %v623, %v584
    %v632 = vsel %vm630, %v624, %v587
    %633 = vst [vmem:[#allocation8] sm:$0xff] %v631
    %634 = vst [vmem:[#allocation8 + $0x8] sm:$0xff] %v632
    // Predicated region
    $region26: #{tpu_custom_call.1} parent=1 // pred_check
      _
    $region27: #{tpu_custom_call.1} parent=1 // pred_check_branch
      %636 = sbr.rel (0) target = $region29
    $region28: #{tpu_custom_call.1} parent=1 // pred_region
      %s638 = ssub.s32 256, 256
      %639 = vsyncadd [#allocation4], %s638
      %s640 = sshll.u32 [#allocation8], 4
      %s641 = int_to_ptr.vmem [resolvable:$true] %s640
      %646 = dma.vmem_to_hbm [thread:$0]  %s641, 256, %s3, [#allocation4], 128, 128, 8
    $region29: #{tpu_custom_call.1} parent=1 // pred_fallthru
      _
    // Predicated region
    $region30: #{tpu_custom_call.1} parent=1 // pred_check
      _
    $region31: #{tpu_custom_call.1} parent=1 // pred_check_branch
      %648 = sbr.rel (0) target = $region33
    $region32: #{tpu_custom_call.1} parent=1 // pred_region
      %649 = dma.done [#allocation4], 256
    $region33: #{tpu_custom_call.1} parent=1 // pred_fallthru
      _
    %650 = vsyncpa [#allocation3], 1
    %651 = vsyncpa [#allocation6], 1
    %652 = vsyncpa [#allocation4], 1

</llo_original>
